<compile_context>
chip_gen: v7x
topology: tpu7x:2x2x1
jax: 0.10.0
libtpu: 0.0.40
codegen_flags: <defaults>
</compile_context>

<pallas_src>
import functools

import jax
import jax.numpy as jnp
from jax.experimental import pallas as pl
from jax.experimental.pallas import tpu as pltpu


def _round_up(x, m):
    return ((x + m - 1) // m) * m


def _make_fused_kernel(num_layers):
    """Kernel running `num_layers` fused (RBF + Linear) stages on one batch
    tile; the activation stays in vregs/VMEM between stages.

    Ref layout per call:
      x_ref                    : [TN, F0]   input tile (true feature width)
      for each layer l:
        ct2_ref  : [F_l, C_l]  centres^T pre-scaled by 2/sigma^2 (column-wise)
        niss_ref : [1,   C_l]  -1/sigma^2
        c2p_ref  : [1,   C_l]  -||centre||^2 / sigma^2
        wt_ref   : [C_l, O_l]  Linear weight, pre-transposed (optionally bf16)
        b_ref    : [1,   O_l]  Linear bias (f32)
      o_ref                    : [TN, O_last]  output tile
    """

    def kernel(x_ref, *refs):
        o_ref = refs[-1]
        prefs = refs[:-1]

        out = x_ref[...].astype(jnp.float32)                      # [TN, F]
        for l in range(num_layers):
            ct2, niss, c2p, wt, b = prefs[5 * l: 5 * l + 5]
            # -dist^2/sigma^2 with constants folded into the params:
            #   arg = -||x||^2/sigma^2 + x @ (2 c^T / sigma^2) - ||c||^2/sigma^2
            x2 = jnp.sum(out * out, axis=-1, keepdims=True)       # [TN, 1]
            arg = (x2 * niss[...]
                   + jnp.dot(out, ct2[...],                        # f32 MXU
                             preferred_element_type=jnp.float32)
                   + c2p[...])                                     # [TN, C]
            arg = jnp.minimum(arg, 0.0)        # == clamping d2 >= 0
            phi = jnp.exp(arg)                 # gaussian basis (EUP)
            out = jnp.dot(phi.astype(wt.dtype), wt[...],
                          preferred_element_type=jnp.float32) + b[...]

        o_ref[...] = out.astype(o_ref.dtype)

    return kernel


def _prepare_layer_params(centres, log_sigmas, weight, bias, param_dtype):
    """Hoist grid-invariant math; fold 1/sigma^2 into the centre/norm terms.
    No padding: all dims keep their true (full-array) sizes."""
    centres = centres.astype(jnp.float32)                         # [C, F]
    iss = jnp.exp(-2.0 * log_sigmas.astype(jnp.float32))          # 1/sigma^2 [C]
    ct2 = (centres * (2.0 * iss)[:, None]).T                      # [F, C], f32
    niss = (-iss)[None, :]                                        # [1, C]
    c2p = (-iss * jnp.sum(centres * centres, axis=-1))[None, :]   # [1, C]
    wt = weight.T.astype(param_dtype)                             # [C, O]
    b = bias.astype(jnp.float32)[None, :]                         # [1, O]
    return ct2, niss, c2p, wt, b


@functools.partial(jax.jit, static_argnames=("tile_n", "param_dtype"))
def rbf_net_forward(x, params, *, tile_n=1024, param_dtype=jnp.float32):
    """Fused RBFNet forward. x:[N,F0]; params: tuple of
    (centres[C,F], log_sigmas[C], weight[O,C], bias[O]) per layer -> [N, O_last]."""
    N, F0 = x.shape
    num_layers = len(params)

    # Batch tile: multiple of 8 sublanes; aim for >= 8 grid steps (>= 4 per TC
    # once v7x shards the "parallel" batch axis across its 2 TensorCores),
    # capped at tile_n so large batches use big, roofline-friendly tiles.
    target_steps = 8
    tn = _round_up(max(1, -(-N // target_steps)), 8)
    tn = max(8, min(tn, _round_up(tile_n, 8), _round_up(N, 8)))
    n_pad = _round_up(N, tn)

    prepped = []
    for (centres, log_sigmas, weight, bias) in params:
        prepped.append(
            _prepare_layer_params(centres, log_sigmas, weight, bias, param_dtype))

    O_last = params[-1][2].shape[0]

    # Only pad batch rows (zeros) when N is not a tile multiple; no feature pad.
    if n_pad > N:
        x_in = jnp.pad(x.astype(jnp.float32), ((0, n_pad - N), (0, 0)))
    else:
        x_in = x.astype(jnp.float32)

    in_specs = [pl.BlockSpec((tn, F0), lambda i: (i, 0))]          # x tile
    flat_params = []
    for (ct2, niss, c2p, wt, b) in prepped:
        F_l, C_l = ct2.shape
        O_l = wt.shape[1]
        in_specs += [
            pl.BlockSpec((F_l, C_l), lambda i: (0, 0)),            # 2*c^T/sigma^2
            pl.BlockSpec((1, C_l), lambda i: (0, 0)),              # -1/sigma^2
            pl.BlockSpec((1, C_l), lambda i: (0, 0)),              # -||c||^2/sigma^2
            pl.BlockSpec((C_l, O_l), lambda i: (0, 0)),            # weight^T
            pl.BlockSpec((1, O_l), lambda i: (0, 0)),              # bias
        ]
        flat_params += [ct2, niss, c2p, wt, b]

    # Advisory cost estimate (real, unpadded numbers).
    flops = 0
    transcendentals = 0
    param_bytes = 0
    f_in = F0
    for (centres, log_sigmas, weight, bias) in params:
        C_l, O_l = centres.shape[0], weight.shape[0]
        flops += 2 * N * (f_in * C_l + C_l * O_l) + 4 * N * C_l
        transcendentals += N * C_l
        param_bytes += 4 * (centres.size + log_sigmas.size + weight.size + bias.size)
        f_in = O_l
    bytes_accessed = 4 * (N * F0 + N * O_last) + param_bytes

    out = pl.pallas_call(
        _make_fused_kernel(num_layers),
        out_shape=jax.ShapeDtypeStruct((n_pad, O_last), jnp.float32),
        grid_spec=pltpu.PrefetchScalarGridSpec(
            num_scalar_prefetch=0,
            grid=(n_pad // tn,),
            in_specs=in_specs,
            out_specs=pl.BlockSpec((tn, O_last), lambda i: (i, 0)),
        ),
        compiler_params=pltpu.CompilerParams(
            dimension_semantics=("parallel",),
            vmem_limit_bytes=32 * 1024 * 1024,
        ),
        cost_estimate=pl.CostEstimate(
            flops=flops,
            transcendentals=transcendentals,
            bytes_accessed=bytes_accessed,
        ),
    )(x_in, *flat_params)

    if n_pad > N:
        out = out[:N]
    return out


def init_rbf_net_params(key, layer_widths, layer_centres):
    """Deterministic init mirroring the PyTorch module: centres ~ N(0,1),
    log_sigmas = 0, Linear weight/bias ~ U(-k, k) with k = 1/sqrt(fan_in)."""
    params = []
    for (in_f, out_f), n_centres in zip(layer_widths, layer_centres):
        key, k1, k2, k3 = jax.random.split(key, 4)
        centres = jax.random.normal(k1, (n_centres, in_f), jnp.float32)
        log_sigmas = jnp.zeros((n_centres,), jnp.float32)
        bound = 1.0 / jnp.sqrt(jnp.float32(n_centres))
        weight = jax.random.uniform(k2, (out_f, n_centres), jnp.float32,
                                    minval=-bound, maxval=bound)
        bias = jax.random.uniform(k3, (out_f,), jnp.float32,
                                  minval=-bound, maxval=bound)
        params.append((centres, log_sigmas, weight, bias))
    return params


def _reference_forward(x, params):
    """Plain-JAX reference replicating the PyTorch expand/pow/sum formulation."""
    out = x.astype(jnp.float32)
    for (centres, log_sigmas, weight, bias) in params:
        diff = out[:, None, :] - centres[None, :, :]              # [N, C, F]
        dist = jnp.sqrt(jnp.sum(diff * diff, axis=-1)) / jnp.exp(log_sigmas)[None, :]
        phi = jnp.exp(-(dist * dist))                             # gaussian
        out = phi @ weight.T + bias[None, :]
    return out


if __name__ == "__main__":
    # Two (RBF + Linear) stages: 4 -> [16 centres] -> 8 -> [16 centres] -> 4
    layer_widths = [(4, 8), (8, 4)]
    layer_centres = [16, 16]
    N = 1024  # -> batch tile 128, 8 grid steps (>=4 per TC on v7x)

    key = jax.random.PRNGKey(0)
    key, kx = jax.random.split(key)
    x = jax.random.normal(kx, (N, layer_widths[0][0]), jnp.float32)

    params = init_rbf_net_params(key, layer_widths, layer_centres)
    params = tuple(tuple(p) for p in params)

    y = rbf_net_forward(x, params)
    y = jax.block_until_ready(y)

    y_ref = _reference_forward(x, params)
    assert y.shape == (N, layer_widths[-1][1])
    assert jnp.allclose(y, y_ref, atol=2e-4, rtol=2e-4)

    print("KERNEL_OK")
</pallas_src>

<mosaic_0001>
module attributes {stable_mosaic.version = 11 : i64} {
  func.func @kernel(%arg0: i32, %arg1: memref<128x4xf32, #tpu.memory_space<vmem>>, %arg2: memref<4x16xf32, #tpu.memory_space<vmem>>, %arg3: memref<1x16xf32, #tpu.memory_space<vmem>>, %arg4: memref<1x16xf32, #tpu.memory_space<vmem>>, %arg5: memref<16x8xf32, #tpu.memory_space<vmem>>, %arg6: memref<1x8xf32, #tpu.memory_space<vmem>>, %arg7: memref<8x16xf32, #tpu.memory_space<vmem>>, %arg8: memref<1x16xf32, #tpu.memory_space<vmem>>, %arg9: memref<1x16xf32, #tpu.memory_space<vmem>>, %arg10: memref<16x4xf32, #tpu.memory_space<vmem>>, %arg11: memref<1x4xf32, #tpu.memory_space<vmem>>, %arg12: memref<128x4xf32, #tpu.memory_space<vmem>>) attributes {dimension_semantics = [#tpu.dimension_semantics<parallel>], iteration_bounds = array<i64: 8>, scalar_prefetch = 0 : i64, scratch_operands = 0 : i64, tpu.core_type = #tpu.core_type<tc>, window_params = [{transform_indices = @transform_0, window_bounds = array<i64: 128, 4>}, {pipeline_mode = #tpu.pipeline_mode<synchronous>, transform_indices = @transform_1, window_bounds = array<i64: 4, 16>}, {pipeline_mode = #tpu.pipeline_mode<synchronous>, transform_indices = @transform_2, window_bounds = array<i64: 1, 16>}, {pipeline_mode = #tpu.pipeline_mode<synchronous>, transform_indices = @transform_3, window_bounds = array<i64: 1, 16>}, {pipeline_mode = #tpu.pipeline_mode<synchronous>, transform_indices = @transform_4, window_bounds = array<i64: 16, 8>}, {pipeline_mode = #tpu.pipeline_mode<synchronous>, transform_indices = @transform_5, window_bounds = array<i64: 1, 8>}, {pipeline_mode = #tpu.pipeline_mode<synchronous>, transform_indices = @transform_6, window_bounds = array<i64: 8, 16>}, {pipeline_mode = #tpu.pipeline_mode<synchronous>, transform_indices = @transform_7, window_bounds = array<i64: 1, 16>}, {pipeline_mode = #tpu.pipeline_mode<synchronous>, transform_indices = @transform_8, window_bounds = array<i64: 1, 16>}, {pipeline_mode = #tpu.pipeline_mode<synchronous>, transform_indices = @transform_9, window_bounds = array<i64: 16, 4>}, {pipeline_mode = #tpu.pipeline_mode<synchronous>, transform_indices = @transform_10, window_bounds = array<i64: 1, 4>}, {transform_indices = @transform_11, window_bounds = array<i64: 128, 4>}]} {
    %c0 = arith.constant 0 : index
    %c0_0 = arith.constant 0 : index
    %0 = vector.load %arg1[%c0, %c0_0] : memref<128x4xf32, #tpu.memory_space<vmem>>, vector<128x4xf32>
    %1 = arith.mulf %0, %0 : vector<128x4xf32>
    %cst = arith.constant dense<0.000000e+00> : vector<128xf32>
    %2 = vector.multi_reduction <add>, %1, %cst [1] : vector<128x4xf32> to vector<128xf32>
    %3 = vector.shape_cast %2 : vector<128xf32> to vector<128x1xf32>
    %c0_1 = arith.constant 0 : index
    %c0_2 = arith.constant 0 : index
    %4 = vector.load %arg3[%c0_1, %c0_2] : memref<1x16xf32, #tpu.memory_space<vmem>>, vector<1x16xf32>
    %5 = vector.broadcast %3 : vector<128x1xf32> to vector<128x16xf32>
    %6 = vector.broadcast %4 : vector<1x16xf32> to vector<128x16xf32>
    %7 = arith.mulf %5, %6 : vector<128x16xf32>
    %c0_3 = arith.constant 0 : index
    %c0_4 = arith.constant 0 : index
    %8 = vector.load %arg2[%c0_3, %c0_4] : memref<4x16xf32, #tpu.memory_space<vmem>>, vector<4x16xf32>
    %cst_5 = arith.constant dense<0.000000e+00> : vector<128x16xf32>
    %9 = tpu.matmul %0, %8, %cst_5 {dimension_numbers = #tpu.dot_dimension_numbers<[1], [0], [0], [1], [0, 0, 1, 1], [], []>} : vector<128x4xf32>, vector<4x16xf32>, vector<128x16xf32> -> vector<128x16xf32>
    %10 = arith.addf %7, %9 : vector<128x16xf32>
    %c0_6 = arith.constant 0 : index
    %c0_7 = arith.constant 0 : index
    %11 = vector.load %arg4[%c0_6, %c0_7] : memref<1x16xf32, #tpu.memory_space<vmem>>, vector<1x16xf32>
    %12 = vector.broadcast %11 : vector<1x16xf32> to vector<128x16xf32>
    %13 = arith.addf %10, %12 : vector<128x16xf32>
    %cst_8 = arith.constant 0.000000e+00 : f32
    %14 = vector.broadcast %cst_8 : f32 to vector<128x16xf32>
    %15 = arith.minimumf %13, %14 : vector<128x16xf32>
    %16 = math.exp %15 : vector<128x16xf32>
    %c0_9 = arith.constant 0 : index
    %c0_10 = arith.constant 0 : index
    %17 = vector.load %arg5[%c0_9, %c0_10] : memref<16x8xf32, #tpu.memory_space<vmem>>, vector<16x8xf32>
    %cst_11 = arith.constant dense<0.000000e+00> : vector<128x8xf32>
    %18 = tpu.matmul %16, %17, %cst_11 {dimension_numbers = #tpu.dot_dimension_numbers<[1], [0], [0], [1], [0, 0, 1, 1], [], []>} : vector<128x16xf32>, vector<16x8xf32>, vector<128x8xf32> -> vector<128x8xf32>
    %c0_12 = arith.constant 0 : index
    %c0_13 = arith.constant 0 : index
    %19 = vector.load %arg6[%c0_12, %c0_13] : memref<1x8xf32, #tpu.memory_space<vmem>>, vector<1x8xf32>
    %20 = vector.broadcast %19 : vector<1x8xf32> to vector<128x8xf32>
    %21 = arith.addf %18, %20 : vector<128x8xf32>
    %22 = arith.mulf %21, %21 : vector<128x8xf32>
    %cst_14 = arith.constant dense<0.000000e+00> : vector<128xf32>
    %23 = vector.multi_reduction <add>, %22, %cst_14 [1] : vector<128x8xf32> to vector<128xf32>
    %24 = vector.shape_cast %23 : vector<128xf32> to vector<128x1xf32>
    %c0_15 = arith.constant 0 : index
    %c0_16 = arith.constant 0 : index
    %25 = vector.load %arg8[%c0_15, %c0_16] : memref<1x16xf32, #tpu.memory_space<vmem>>, vector<1x16xf32>
    %26 = vector.broadcast %24 : vector<128x1xf32> to vector<128x16xf32>
    %27 = vector.broadcast %25 : vector<1x16xf32> to vector<128x16xf32>
    %28 = arith.mulf %26, %27 : vector<128x16xf32>
    %c0_17 = arith.constant 0 : index
    %c0_18 = arith.constant 0 : index
    %29 = vector.load %arg7[%c0_17, %c0_18] : memref<8x16xf32, #tpu.memory_space<vmem>>, vector<8x16xf32>
    %cst_19 = arith.constant dense<0.000000e+00> : vector<128x16xf32>
    %30 = tpu.matmul %21, %29, %cst_19 {dimension_numbers = #tpu.dot_dimension_numbers<[1], [0], [0], [1], [0, 0, 1, 1], [], []>} : vector<128x8xf32>, vector<8x16xf32>, vector<128x16xf32> -> vector<128x16xf32>
    %31 = arith.addf %28, %30 : vector<128x16xf32>
    %c0_20 = arith.constant 0 : index
    %c0_21 = arith.constant 0 : index
    %32 = vector.load %arg9[%c0_20, %c0_21] : memref<1x16xf32, #tpu.memory_space<vmem>>, vector<1x16xf32>
    %33 = vector.broadcast %32 : vector<1x16xf32> to vector<128x16xf32>
    %34 = arith.addf %31, %33 : vector<128x16xf32>
    %cst_22 = arith.constant 0.000000e+00 : f32
    %35 = vector.broadcast %cst_22 : f32 to vector<128x16xf32>
    %36 = arith.minimumf %34, %35 : vector<128x16xf32>
    %37 = math.exp %36 : vector<128x16xf32>
    %c0_23 = arith.constant 0 : index
    %c0_24 = arith.constant 0 : index
    %38 = vector.load %arg10[%c0_23, %c0_24] : memref<16x4xf32, #tpu.memory_space<vmem>>, vector<16x4xf32>
    %cst_25 = arith.constant dense<0.000000e+00> : vector<128x4xf32>
    %39 = tpu.matmul %37, %38, %cst_25 {dimension_numbers = #tpu.dot_dimension_numbers<[1], [0], [0], [1], [0, 0, 1, 1], [], []>} : vector<128x16xf32>, vector<16x4xf32>, vector<128x4xf32> -> vector<128x4xf32>
    %c0_26 = arith.constant 0 : index
    %c0_27 = arith.constant 0 : index
    %40 = vector.load %arg11[%c0_26, %c0_27] : memref<1x4xf32, #tpu.memory_space<vmem>>, vector<1x4xf32>
    %41 = vector.broadcast %40 : vector<1x4xf32> to vector<128x4xf32>
    %42 = arith.addf %39, %41 : vector<128x4xf32>
    %c0_28 = arith.constant 0 : index
    %c0_29 = arith.constant 0 : index
    %43 = vector.load %arg12[%c0_28, %c0_29] : memref<128x4xf32, #tpu.memory_space<vmem>>, vector<128x4xf32>
    tpu.vector_store %arg12[%c0_28, %c0_29], %42 {strides = array<i32>} : memref<128x4xf32, #tpu.memory_space<vmem>>, vector<128x4xf32>,
    return
  }
  func.func @transform_0(%arg0: i32) -> (i32, i32) {
    %c0_i32 = arith.constant 0 : i32
    %c0_i32_0 = arith.constant 0 : i32
    return %arg0, %c0_i32 : i32, i32
  }
  func.func @transform_1(%arg0: i32) -> (i32, i32) {
    %c0_i32 = arith.constant 0 : i32
    %c0_i32_0 = arith.constant 0 : i32
    %c0_i32_1 = arith.constant 0 : i32
    return %c0_i32, %c0_i32_0 : i32, i32
  }
  func.func @transform_2(%arg0: i32) -> (i32, i32) {
    %c0_i32 = arith.constant 0 : i32
    %c0_i32_0 = arith.constant 0 : i32
    %c0_i32_1 = arith.constant 0 : i32
    return %c0_i32, %c0_i32_0 : i32, i32
  }
  func.func @transform_3(%arg0: i32) -> (i32, i32) {
    %c0_i32 = arith.constant 0 : i32
    %c0_i32_0 = arith.constant 0 : i32
    %c0_i32_1 = arith.constant 0 : i32
    return %c0_i32, %c0_i32_0 : i32, i32
  }
  func.func @transform_4(%arg0: i32) -> (i32, i32) {
    %c0_i32 = arith.constant 0 : i32
    %c0_i32_0 = arith.constant 0 : i32
    %c0_i32_1 = arith.constant 0 : i32
    return %c0_i32, %c0_i32_0 : i32, i32
  }
  func.func @transform_5(%arg0: i32) -> (i32, i32) {
    %c0_i32 = arith.constant 0 : i32
    %c0_i32_0 = arith.constant 0 : i32
    %c0_i32_1 = arith.constant 0 : i32
    return %c0_i32, %c0_i32_0 : i32, i32
  }
  func.func @transform_6(%arg0: i32) -> (i32, i32) {
    %c0_i32 = arith.constant 0 : i32
    %c0_i32_0 = arith.constant 0 : i32
    %c0_i32_1 = arith.constant 0 : i32
    return %c0_i32, %c0_i32_0 : i32, i32
  }
  func.func @transform_7(%arg0: i32) -> (i32, i32) {
    %c0_i32 = arith.constant 0 : i32
    %c0_i32_0 = arith.constant 0 : i32
    %c0_i32_1 = arith.constant 0 : i32
    return %c0_i32, %c0_i32_0 : i32, i32
  }
  func.func @transform_8(%arg0: i32) -> (i32, i32) {
    %c0_i32 = arith.constant 0 : i32
    %c0_i32_0 = arith.constant 0 : i32
    %c0_i32_1 = arith.constant 0 : i32
    return %c0_i32, %c0_i32_0 : i32, i32
  }
  func.func @transform_9(%arg0: i32) -> (i32, i32) {
    %c0_i32 = arith.constant 0 : i32
    %c0_i32_0 = arith.constant 0 : i32
    %c0_i32_1 = arith.constant 0 : i32
    return %c0_i32, %c0_i32_0 : i32, i32
  }
  func.func @transform_10(%arg0: i32) -> (i32, i32) {
    %c0_i32 = arith.constant 0 : i32
    %c0_i32_0 = arith.constant 0 : i32
    %c0_i32_1 = arith.constant 0 : i32
    return %c0_i32, %c0_i32_0 : i32, i32
  }
  func.func @transform_11(%arg0: i32) -> (i32, i32) {
    %c0_i32 = arith.constant 0 : i32
    %c0_i32_0 = arith.constant 0 : i32
    return %arg0, %c0_i32 : i32, i32
  }
}

</mosaic_0001>

<llo_original>
// kernel: rbf_net_forward.1
$region0: #{rbf_net_forward.1}
  #allocation0 [shape = 'u32[]', space=smem, size = 0x4, offset = 0x4, fixed_abs, tag = 'smem constant byte address 0x4 - core index']
  #allocation1 [shape = 'u32[144,128]{1,0:T(1,128)}', space=vmem, size = 0x12000, scoped, tag = 'internal scratch']
  %s0 = inlined_call_operand.vmem [shape: f32[1024,4], index: 0, kind: input, shape index: {}]
  %s1 = inlined_call_operand.vmem [shape: f32[4,16], index: 1, kind: input, shape index: {}]
  %s2 = inlined_call_operand.vmem [shape: f32[1,16], index: 2, kind: input, shape index: {}]
  %s3 = inlined_call_operand.vmem [shape: f32[1,16], index: 3, kind: input, shape index: {}]
  %s4 = inlined_call_operand.vmem [shape: f32[16,8], index: 4, kind: input, shape index: {}]
  %s5 = inlined_call_operand.vmem [shape: f32[1,8], index: 5, kind: input, shape index: {}]
  %s6 = inlined_call_operand.vmem [shape: f32[8,16], index: 6, kind: input, shape index: {}]
  %s7 = inlined_call_operand.vmem [shape: f32[1,16], index: 7, kind: input, shape index: {}]
  %s8 = inlined_call_operand.vmem [shape: f32[1,16], index: 8, kind: input, shape index: {}]
  %s9 = inlined_call_operand.vmem [shape: f32[16,4], index: 9, kind: input, shape index: {}]
  %s10 = inlined_call_operand.vmem [shape: f32[1,4], index: 10, kind: input, shape index: {}]
  %s11 = inlined_call_operand.vmem [shape: f32[1024,4], index: 11, kind: output, shape index: {}]
  %s12 = sld [smem:[#allocation0]]
  $region77: #{rbf_net_forward.1} parent=0
    _
  %s14 = ssub.s32 1, %s12
  %s15 = scalar_select 0, %s14, %s12
  loop: start=0, step=1, limit=10
  $region2: #{rbf_net_forward.1} parent=0 // loop_pre_header
    _
  $region3: #{rbf_net_forward.1} parent=0 // loop_header
    %s17 = sphi 0, %s21
    %p18 = scmp.ge.s32.totalorder %s17, 10
    %s27 = sphi 0, %s29
    %s30 = sphi 0, %s27
    %s31 = sphi 0, %s30
    %s47 = sphi 0, %s31
    %s51 = sphi 0, %s51
    %s53 = sphi 0, %s51
    %s54 = sphi 0, %s53
    %s68 = sphi 0, %s54
    %s72 = sphi 0, %s72
    %s74 = sphi 0, %s72
    %s75 = sphi 0, %s74
    %s89 = sphi 0, %s75
    %s93 = sphi 0, %s93
    %s95 = sphi 0, %s93
    %s96 = sphi 0, %s95
    %s110 = sphi 0, %s96
    %s114 = sphi 0, %s114
    %s116 = sphi 0, %s114
    %s117 = sphi 0, %s116
    %s131 = sphi 0, %s117
    %s135 = sphi 0, %s135
    %s137 = sphi 0, %s135
    %s138 = sphi 0, %s137
    %s152 = sphi 0, %s138
    %s156 = sphi 0, %s156
    %s158 = sphi 0, %s156
    %s159 = sphi 0, %s158
    %s173 = sphi 0, %s159
    %s177 = sphi 0, %s177
    %s179 = sphi 0, %s177
    %s180 = sphi 0, %s179
    %s194 = sphi 0, %s180
    %s198 = sphi 0, %s198
    %s200 = sphi 0, %s198
    %s201 = sphi 0, %s200
    %s215 = sphi 0, %s201
    %s219 = sphi 0, %s219
    %s221 = sphi 0, %s219
    %s222 = sphi 0, %s221
    %s236 = sphi 0, %s222
    %s240 = sphi 0, %s240
    %s242 = sphi 0, %s240
    %s243 = sphi 0, %s242
    %s257 = sphi 0, %s243
    %s263 = sphi 0, %s265
    %s266 = sphi 0, %s263
    %s267 = sphi 0, %s266
    %s283 = sphi 0, %s267
  $region4: #{rbf_net_forward.1} parent=0 // loop_header_branch
    %20 = sbr.rel (%p18) target = $region8
  $region5: #{rbf_net_forward.1} parent=0 // loop_body
    %s22 = ssub.s32 %s17, 1
    %s23 = ssub.s32 %s17, 2
    %s24 = sadd.s32 %s17, 1
    %s25 = ssub.s32 %s17, %s24
    %p26 = scmp.eq.s32.totalorder %s25, 0
    %s28 = sadd.s32 %s27, 1
    %s29 = scalar_select %p26, %s27, %s28
    %p32 = pneg %p26
    %p33 = scmp.eq.s32.totalorder %s17, 7
    %p34 = por %p32, %p33
    %p35 = scmp.ne.s32.totalorder %s27, %s30
    %p36 = scmp.eq.s32.totalorder %s17, 0
    %p37 = por %p35, %p36
    %p38 = scmp.ne.s32.totalorder %s27, %s30
    %p39 = scmp.eq.s32.totalorder %s22, 7
    %p40 = por %p38, %p39
    %p41 = scmp.ne.s32.totalorder %s30, %s31
    %p42 = scmp.eq.s32.totalorder %s22, 0
    %p43 = por %p41, %p42
    %p44 = scmp.ne.s32.totalorder %s30, %s31
    %p45 = scmp.eq.s32.totalorder %s23, 7
    %p46 = por %p44, %p45
    %p48 = scmp.ne.s32.totalorder %s31, %s47
    %p49 = scmp.eq.s32.totalorder %s23, 0
    %p50 = por %p48, %p49
    %s52 = sadd.s32 %s51, 1
    %p55 = scmp.eq.s32.totalorder %s17, 7
    %p56 = scmp.ne.s32.totalorder %s51, %s53
    %p57 = scmp.eq.s32.totalorder %s17, 0
    %p58 = por %p56, %p57
    %p59 = scmp.ne.s32.totalorder %s51, %s53
    %p60 = scmp.eq.s32.totalorder %s22, 7
    %p61 = por %p59, %p60
    %p62 = scmp.ne.s32.totalorder %s53, %s54
    %p63 = scmp.eq.s32.totalorder %s22, 0
    %p64 = por %p62, %p63
    %p65 = scmp.ne.s32.totalorder %s53, %s54
    %p66 = scmp.eq.s32.totalorder %s23, 7
    %p67 = por %p65, %p66
    %p69 = scmp.ne.s32.totalorder %s54, %s68
    %p70 = scmp.eq.s32.totalorder %s23, 0
    %p71 = por %p69, %p70
    %s73 = sadd.s32 %s72, 1
    %p76 = scmp.eq.s32.totalorder %s17, 7
    %p77 = scmp.ne.s32.totalorder %s72, %s74
    %p78 = scmp.eq.s32.totalorder %s17, 0
    %p79 = por %p77, %p78
    %p80 = scmp.ne.s32.totalorder %s72, %s74
    %p81 = scmp.eq.s32.totalorder %s22, 7
    %p82 = por %p80, %p81
    %p83 = scmp.ne.s32.totalorder %s74, %s75
    %p84 = scmp.eq.s32.totalorder %s22, 0
    %p85 = por %p83, %p84
    %p86 = scmp.ne.s32.totalorder %s74, %s75
    %p87 = scmp.eq.s32.totalorder %s23, 7
    %p88 = por %p86, %p87
    %p90 = scmp.ne.s32.totalorder %s75, %s89
    %p91 = scmp.eq.s32.totalorder %s23, 0
    %p92 = por %p90, %p91
    %s94 = sadd.s32 %s93, 1
    %p97 = scmp.eq.s32.totalorder %s17, 7
    %p98 = scmp.ne.s32.totalorder %s93, %s95
    %p99 = scmp.eq.s32.totalorder %s17, 0
    %p100 = por %p98, %p99
    %p101 = scmp.ne.s32.totalorder %s93, %s95
    %p102 = scmp.eq.s32.totalorder %s22, 7
    %p103 = por %p101, %p102
    %p104 = scmp.ne.s32.totalorder %s95, %s96
    %p105 = scmp.eq.s32.totalorder %s22, 0
    %p106 = por %p104, %p105
    %p107 = scmp.ne.s32.totalorder %s95, %s96
    %p108 = scmp.eq.s32.totalorder %s23, 7
    %p109 = por %p107, %p108
    %p111 = scmp.ne.s32.totalorder %s96, %s110
    %p112 = scmp.eq.s32.totalorder %s23, 0
    %p113 = por %p111, %p112
    %s115 = sadd.s32 %s114, 1
    %p118 = scmp.eq.s32.totalorder %s17, 7
    %p119 = scmp.ne.s32.totalorder %s114, %s116
    %p120 = scmp.eq.s32.totalorder %s17, 0
    %p121 = por %p119, %p120
    %p122 = scmp.ne.s32.totalorder %s114, %s116
    %p123 = scmp.eq.s32.totalorder %s22, 7
    %p124 = por %p122, %p123
    %p125 = scmp.ne.s32.totalorder %s116, %s117
    %p126 = scmp.eq.s32.totalorder %s22, 0
    %p127 = por %p125, %p126
    %p128 = scmp.ne.s32.totalorder %s116, %s117
    %p129 = scmp.eq.s32.totalorder %s23, 7
    %p130 = por %p128, %p129
    %p132 = scmp.ne.s32.totalorder %s117, %s131
    %p133 = scmp.eq.s32.totalorder %s23, 0
    %p134 = por %p132, %p133
    %s136 = sadd.s32 %s135, 1
    %p139 = scmp.eq.s32.totalorder %s17, 7
    %p140 = scmp.ne.s32.totalorder %s135, %s137
    %p141 = scmp.eq.s32.totalorder %s17, 0
    %p142 = por %p140, %p141
    %p143 = scmp.ne.s32.totalorder %s135, %s137
    %p144 = scmp.eq.s32.totalorder %s22, 7
    %p145 = por %p143, %p144
    %p146 = scmp.ne.s32.totalorder %s137, %s138
    %p147 = scmp.eq.s32.totalorder %s22, 0
    %p148 = por %p146, %p147
    %p149 = scmp.ne.s32.totalorder %s137, %s138
    %p150 = scmp.eq.s32.totalorder %s23, 7
    %p151 = por %p149, %p150
    %p153 = scmp.ne.s32.totalorder %s138, %s152
    %p154 = scmp.eq.s32.totalorder %s23, 0
    %p155 = por %p153, %p154
    %s157 = sadd.s32 %s156, 1
    %p160 = scmp.eq.s32.totalorder %s17, 7
    %p161 = scmp.ne.s32.totalorder %s156, %s158
    %p162 = scmp.eq.s32.totalorder %s17, 0
    %p163 = por %p161, %p162
    %p164 = scmp.ne.s32.totalorder %s156, %s158
    %p165 = scmp.eq.s32.totalorder %s22, 7
    %p166 = por %p164, %p165
    %p167 = scmp.ne.s32.totalorder %s158, %s159
    %p168 = scmp.eq.s32.totalorder %s22, 0
    %p169 = por %p167, %p168
    %p170 = scmp.ne.s32.totalorder %s158, %s159
    %p171 = scmp.eq.s32.totalorder %s23, 7
    %p172 = por %p170, %p171
    %p174 = scmp.ne.s32.totalorder %s159, %s173
    %p175 = scmp.eq.s32.totalorder %s23, 0
    %p176 = por %p174, %p175
    %s178 = sadd.s32 %s177, 1
    %p181 = scmp.eq.s32.totalorder %s17, 7
    %p182 = scmp.ne.s32.totalorder %s177, %s179
    %p183 = scmp.eq.s32.totalorder %s17, 0
    %p184 = por %p182, %p183
    %p185 = scmp.ne.s32.totalorder %s177, %s179
    %p186 = scmp.eq.s32.totalorder %s22, 7
    %p187 = por %p185, %p186
    %p188 = scmp.ne.s32.totalorder %s179, %s180
    %p189 = scmp.eq.s32.totalorder %s22, 0
    %p190 = por %p188, %p189
    %p191 = scmp.ne.s32.totalorder %s179, %s180
    %p192 = scmp.eq.s32.totalorder %s23, 7
    %p193 = por %p191, %p192
    %p195 = scmp.ne.s32.totalorder %s180, %s194
    %p196 = scmp.eq.s32.totalorder %s23, 0
    %p197 = por %p195, %p196
    %s199 = sadd.s32 %s198, 1
    %p202 = scmp.eq.s32.totalorder %s17, 7
    %p203 = scmp.ne.s32.totalorder %s198, %s200
    %p204 = scmp.eq.s32.totalorder %s17, 0
    %p205 = por %p203, %p204
    %p206 = scmp.ne.s32.totalorder %s198, %s200
    %p207 = scmp.eq.s32.totalorder %s22, 7
    %p208 = por %p206, %p207
    %p209 = scmp.ne.s32.totalorder %s200, %s201
    %p210 = scmp.eq.s32.totalorder %s22, 0
    %p211 = por %p209, %p210
    %p212 = scmp.ne.s32.totalorder %s200, %s201
    %p213 = scmp.eq.s32.totalorder %s23, 7
    %p214 = por %p212, %p213
    %p216 = scmp.ne.s32.totalorder %s201, %s215
    %p217 = scmp.eq.s32.totalorder %s23, 0
    %p218 = por %p216, %p217
    %s220 = sadd.s32 %s219, 1
    %p223 = scmp.eq.s32.totalorder %s17, 7
    %p224 = scmp.ne.s32.totalorder %s219, %s221
    %p225 = scmp.eq.s32.totalorder %s17, 0
    %p226 = por %p224, %p225
    %p227 = scmp.ne.s32.totalorder %s219, %s221
    %p228 = scmp.eq.s32.totalorder %s22, 7
    %p229 = por %p227, %p228
    %p230 = scmp.ne.s32.totalorder %s221, %s222
    %p231 = scmp.eq.s32.totalorder %s22, 0
    %p232 = por %p230, %p231
    %p233 = scmp.ne.s32.totalorder %s221, %s222
    %p234 = scmp.eq.s32.totalorder %s23, 7
    %p235 = por %p233, %p234
    %p237 = scmp.ne.s32.totalorder %s222, %s236
    %p238 = scmp.eq.s32.totalorder %s23, 0
    %p239 = por %p237, %p238
    %s241 = sadd.s32 %s240, 1
    %p244 = scmp.eq.s32.totalorder %s17, 7
    %p245 = scmp.ne.s32.totalorder %s240, %s242
    %p246 = scmp.eq.s32.totalorder %s17, 0
    %p247 = por %p245, %p246
    %p248 = scmp.ne.s32.totalorder %s240, %s242
    %p249 = scmp.eq.s32.totalorder %s22, 7
    %p250 = por %p248, %p249
    %p251 = scmp.ne.s32.totalorder %s242, %s243
    %p252 = scmp.eq.s32.totalorder %s22, 0
    %p253 = por %p251, %p252
    %p254 = scmp.ne.s32.totalorder %s242, %s243
    %p255 = scmp.eq.s32.totalorder %s23, 7
    %p256 = por %p254, %p255
    %p258 = scmp.ne.s32.totalorder %s243, %s257
    %p259 = scmp.eq.s32.totalorder %s23, 0
    %p260 = por %p258, %p259
    %s261 = ssub.s32 %s17, %s24
    %p262 = scmp.eq.s32.totalorder %s261, 0
    %s264 = sadd.s32 %s263, 1
    %s265 = scalar_select %p262, %s263, %s264
    %p268 = pneg %p262
    %p269 = scmp.eq.s32.totalorder %s17, 7
    %p270 = por %p268, %p269
    %p271 = scmp.ne.s32.totalorder %s263, %s266
    %p272 = scmp.eq.s32.totalorder %s17, 0
    %p273 = por %p271, %p272
    %p274 = scmp.ne.s32.totalorder %s263, %s266
    %p275 = scmp.eq.s32.totalorder %s22, 7
    %p276 = por %p274, %p275
    %p277 = scmp.ne.s32.totalorder %s266, %s267
    %p278 = scmp.eq.s32.totalorder %s22, 0
    %p279 = por %p277, %p278
    %p280 = scmp.ne.s32.totalorder %s266, %s267
    %p281 = scmp.eq.s32.totalorder %s23, 7
    %p282 = por %p280, %p281
    %p284 = scmp.ne.s32.totalorder %s267, %s283
    %p285 = scmp.eq.s32.totalorder %s23, 0
    %p286 = por %p284, %p285
    %p287 = scmp.le.s32.totalorder 1, %s17
    %p288 = scmp.lt.s32.totalorder %s17, 9
    %p289 = pnand %p287, %p288
    %p290 = pneg %p289
    // Predicated region
    $region9: #{rbf_net_forward.1} parent=5 // pred_check
      _
    $region10: #{rbf_net_forward.1} parent=5 // pred_check_branch
      %292 = sbr.rel (%p289) target = $region12
    $region11: #{rbf_net_forward.1} parent=5 // pred_region
      %s293 = ssub.s32 %s17, 1
      // Predicated region
      $region13: #{rbf_net_forward.1} parent=11 // pred_check
        %p294 = pneg %p64
      $region14: #{rbf_net_forward.1} parent=11 // pred_check_branch
        %296 = sbr.rel (%p294) target = $region16
      $region15: #{rbf_net_forward.1} parent=11 // pred_region
        _
      $region16: #{rbf_net_forward.1} parent=11 // pred_fallthru
        _
      // Predicated region
      $region17: #{rbf_net_forward.1} parent=11 // pred_check
        %p297 = pneg %p85
      $region18: #{rbf_net_forward.1} parent=11 // pred_check_branch
        %299 = sbr.rel (%p297) target = $region20
      $region19: #{rbf_net_forward.1} parent=11 // pred_region
        _
      $region20: #{rbf_net_forward.1} parent=11 // pred_fallthru
        _
      // Predicated region
      $region21: #{rbf_net_forward.1} parent=11 // pred_check
        %p300 = pneg %p106
      $region22: #{rbf_net_forward.1} parent=11 // pred_check_branch
        %302 = sbr.rel (%p300) target = $region24
      $region23: #{rbf_net_forward.1} parent=11 // pred_region
        _
      $region24: #{rbf_net_forward.1} parent=11 // pred_fallthru
        _
      // Predicated region
      $region25: #{rbf_net_forward.1} parent=11 // pred_check
        %p303 = pneg %p127
      $region26: #{rbf_net_forward.1} parent=11 // pred_check_branch
        %305 = sbr.rel (%p303) target = $region28
      $region27: #{rbf_net_forward.1} parent=11 // pred_region
        _
      $region28: #{rbf_net_forward.1} parent=11 // pred_fallthru
        _
      // Predicated region
      $region29: #{rbf_net_forward.1} parent=11 // pred_check
        %p306 = pneg %p148
      $region30: #{rbf_net_forward.1} parent=11 // pred_check_branch
        %308 = sbr.rel (%p306) target = $region32
      $region31: #{rbf_net_forward.1} parent=11 // pred_region
        _
      $region32: #{rbf_net_forward.1} parent=11 // pred_fallthru
        _
      // Predicated region
      $region33: #{rbf_net_forward.1} parent=11 // pred_check
        %p309 = pneg %p169
      $region34: #{rbf_net_forward.1} parent=11 // pred_check_branch
        %311 = sbr.rel (%p309) target = $region36
      $region35: #{rbf_net_forward.1} parent=11 // pred_region
        _
      $region36: #{rbf_net_forward.1} parent=11 // pred_fallthru
        _
      // Predicated region
      $region37: #{rbf_net_forward.1} parent=11 // pred_check
        %p312 = pneg %p190
      $region38: #{rbf_net_forward.1} parent=11 // pred_check_branch
        %314 = sbr.rel (%p312) target = $region40
      $region39: #{rbf_net_forward.1} parent=11 // pred_region
        _
      $region40: #{rbf_net_forward.1} parent=11 // pred_fallthru
        _
      // Predicated region
      $region41: #{rbf_net_forward.1} parent=11 // pred_check
        %p315 = pneg %p211
      $region42: #{rbf_net_forward.1} parent=11 // pred_check_branch
        %317 = sbr.rel (%p315) target = $region44
      $region43: #{rbf_net_forward.1} parent=11 // pred_region
        _
      $region44: #{rbf_net_forward.1} parent=11 // pred_fallthru
        _
      // Predicated region
      $region45: #{rbf_net_forward.1} parent=11 // pred_check
        %p318 = pneg %p232
      $region46: #{rbf_net_forward.1} parent=11 // pred_check_branch
        %320 = sbr.rel (%p318) target = $region48
      $region47: #{rbf_net_forward.1} parent=11 // pred_region
        _
      $region48: #{rbf_net_forward.1} parent=11 // pred_fallthru
        _
      // Predicated region
      $region49: #{rbf_net_forward.1} parent=11 // pred_check
        %p321 = pneg %p253
      $region50: #{rbf_net_forward.1} parent=11 // pred_check_branch
        %323 = sbr.rel (%p321) target = $region52
      $region51: #{rbf_net_forward.1} parent=11 // pred_region
        _
      $region52: #{rbf_net_forward.1} parent=11 // pred_fallthru
        _
    $region12: #{rbf_net_forward.1} parent=5 // pred_fallthru
      _
    %p324 = scmp.lt.s32.totalorder %s17, 8
    // Predicated region
    $region53: #{rbf_net_forward.1} parent=5 // pred_check
      %p325 = pneg %p324
    $region54: #{rbf_net_forward.1} parent=5 // pred_check_branch
      %327 = sbr.rel (%p325) target = $region56
    $region55: #{rbf_net_forward.1} parent=5 // pred_region
      // Predicated region
      $region57: #{rbf_net_forward.1} parent=55 // pred_check
        %p328 = pneg %p37
      $region58: #{rbf_net_forward.1} parent=55 // pred_check_branch
        %330 = sbr.rel (%p328) target = $region60
      $region59: #{rbf_net_forward.1} parent=55 // pred_region
        %s331 = smul.u32 16, %s17
        %p332 = scmp.lt.s32.totalorder %s331, 127
        %s333 = scalar_select %p332, %s331, 127
        %s334 = smul.addr %s333, 8
        %s335 = scalar_lea.vmem %s0, %s334
        %s336 = smul.u32 16, %s17
      $region60: #{rbf_net_forward.1} parent=55 // pred_fallthru
        _
    $region56: #{rbf_net_forward.1} parent=5 // pred_fallthru
      _
    %p337 = scmp.le.s32.totalorder 1, %s17
    %p338 = scmp.lt.s32.totalorder %s17, 9
    %p339 = pnand %p337, %p338
    %p340 = pneg %p339
    // Predicated region
    $region61: #{rbf_net_forward.1} parent=5 // pred_check
      _
    $region62: #{rbf_net_forward.1} parent=5 // pred_check_branch
      %342 = sbr.rel (%p339) target = $region64
    $region63: #{rbf_net_forward.1} parent=5 // pred_region
      %s343 = ssub.s32 %s17, 1
      %s344 = smul.u32 16, %s22
      %p345 = scmp.lt.s32.totalorder %s344, 127
      %s346 = scalar_select %p345, %s344, 127
      %s347 = smul.addr %s346, 8
      %s348 = scalar_lea.vmem %s0, %s347
      %p349 = pneg %p43
      %p350 = pneg %p40
      %p351 = pneg %p64
      %p352 = pneg %p61
      %p353 = pneg %p85
      %p354 = pneg %p82
      %p355 = pneg %p106
      %p356 = pneg %p103
      %p357 = pneg %p127
      %p358 = pneg %p124
      %p359 = pneg %p148
      %p360 = pneg %p145
      %p361 = pneg %p169
      %p362 = pneg %p166
      %p363 = pneg %p190
      %p364 = pneg %p187
      %p365 = pneg %p211
      %p366 = pneg %p208
      %p367 = pneg %p232
      %p368 = pneg %p229
      %p369 = pneg %p253
      %p370 = pneg %p250
      %p371 = pneg %p279
      %p372 = pneg %p276
      %s373 = smul.u32 16, %s22
      %p374 = scmp.lt.s32.totalorder %s373, 127
      %s375 = scalar_select %p374, %s373, 127
      %s376 = smul.addr %s375, 8
      %s377 = scalar_lea.vmem %s11, %s376
      %s378 = smul.u32 16, %s22
      %p379 = scmp.lt.s32.totalorder %s378, 127
      %s380 = scalar_select %p379, %s378, 127
      %s381 = smul.addr %s380, 8
      %s382 = scalar_lea.vmem %s0, %s381
      %s383 = smul.u32 16, %s22
      %s384 = smul.u32 16, %s22
      %p385 = scmp.lt.s32.totalorder %s384, 127
      %s386 = scalar_select %p385, %s384, 127
      %s387 = smul.addr %s386, 8
      %s388 = scalar_lea.vmem %s11, %s387
      %s389 = smul.u32 16, %s22
      %v390 = vld [vmem:[%s382] sm:$0xff]
      %v391 = vld [vmem:[%s382 + $0x8] sm:$0xff]
      %v392 = vld [vmem:[%s382 + $0x10] sm:$0xff]
      %v393 = vld [vmem:[%s382 + $0x18] sm:$0xff]
      %v394 = vld [vmem:[%s382 + $0x20] sm:$0xff]
      %v395 = vld [vmem:[%s382 + $0x28] sm:$0xff]
      %v396 = vld [vmem:[%s382 + $0x30] sm:$0xff]
      %v397 = vld [vmem:[%s382 + $0x38] sm:$0xff]
      %v398 = vld [vmem:[%s382 + $0x40] sm:$0xff]
      %v399 = vld [vmem:[%s382 + $0x48] sm:$0xff]
      %v400 = vld [vmem:[%s382 + $0x50] sm:$0xff]
      %v401 = vld [vmem:[%s382 + $0x58] sm:$0xff]
      %v402 = vld [vmem:[%s382 + $0x60] sm:$0xff]
      %v403 = vld [vmem:[%s382 + $0x68] sm:$0xff]
      %v404 = vld [vmem:[%s382 + $0x70] sm:$0xff]
      %v405 = vld [vmem:[%s382 + $0x78] sm:$0xff]
      %v406 = vmul.f32 %v390, %v390
      %v407 = vmul.f32 %v391, %v391
      %v408 = vmul.f32 %v392, %v392
      %v409 = vmul.f32 %v393, %v393
      %v410 = vmul.f32 %v394, %v394
      %v411 = vmul.f32 %v395, %v395
      %v412 = vmul.f32 %v396, %v396
      %v413 = vmul.f32 %v397, %v397
      %v414 = vmul.f32 %v398, %v398
      %v415 = vmul.f32 %v399, %v399
      %v416 = vmul.f32 %v400, %v400
      %v417 = vmul.f32 %v401, %v401
      %v418 = vmul.f32 %v402, %v402
      %v419 = vmul.f32 %v403, %v403
      %v420 = vmul.f32 %v404, %v404
      %v421 = vmul.f32 %v405, %v405
      %vm422 = vcmask 31744
      %v423 = vsel %vm422, %v406, 0.0
      %424 = vadd.xlane.f32.xlu0 %v423
      %v425 = vpop.xlane.xlu0 %424
      %v426 = vsel %vm422, %v407, 0.0
      %427 = vadd.xlane.f32.xlu0 %v426
      %v428 = vpop.xlane.xlu0 %427
      %v429 = vsel %vm422, %v408, 0.0
      %430 = vadd.xlane.f32.xlu0 %v429
      %v431 = vpop.xlane.xlu0 %430
      %v432 = vsel %vm422, %v409, 0.0
      %433 = vadd.xlane.f32.xlu0 %v432
      %v434 = vpop.xlane.xlu0 %433
      %v435 = vsel %vm422, %v410, 0.0
      %436 = vadd.xlane.f32.xlu0 %v435
      %v437 = vpop.xlane.xlu0 %436
      %v438 = vsel %vm422, %v411, 0.0
      %439 = vadd.xlane.f32.xlu0 %v438
      %v440 = vpop.xlane.xlu0 %439
      %v441 = vsel %vm422, %v412, 0.0
      %442 = vadd.xlane.f32.xlu0 %v441
      %v443 = vpop.xlane.xlu0 %442
      %v444 = vsel %vm422, %v413, 0.0
      %445 = vadd.xlane.f32.xlu0 %v444
      %v446 = vpop.xlane.xlu0 %445
      %v447 = vsel %vm422, %v414, 0.0
      %448 = vadd.xlane.f32.xlu0 %v447
      %v449 = vpop.xlane.xlu0 %448
      %v450 = vsel %vm422, %v415, 0.0
      %451 = vadd.xlane.f32.xlu0 %v450
      %v452 = vpop.xlane.xlu0 %451
      %v453 = vsel %vm422, %v416, 0.0
      %454 = vadd.xlane.f32.xlu0 %v453
      %v455 = vpop.xlane.xlu0 %454
      %v456 = vsel %vm422, %v417, 0.0
      %457 = vadd.xlane.f32.xlu0 %v456
      %v458 = vpop.xlane.xlu0 %457
      %v459 = vsel %vm422, %v418, 0.0
      %460 = vadd.xlane.f32.xlu0 %v459
      %v461 = vpop.xlane.xlu0 %460
      %v462 = vsel %vm422, %v419, 0.0
      %463 = vadd.xlane.f32.xlu0 %v462
      %v464 = vpop.xlane.xlu0 %463
      %v465 = vsel %vm422, %v420, 0.0
      %466 = vadd.xlane.f32.xlu0 %v465
      %v467 = vpop.xlane.xlu0 %466
      %v468 = vsel %vm422, %v421, 0.0
      %469 = vadd.xlane.f32.xlu0 %v468
      %v470 = vpop.xlane.xlu0 %469
      %v471 = vld [vmem:[%s2] sm:$0x1]
      %v473 = vlaneseq
      %v474 = vshrl.u32 %v473, 7
      %v475 = vsub.s32 0, %v474
      %v476 = vrot.slane %v471, %v475
      %v478 = vmul.f32 %v425, %v476
      %v479 = vmul.f32 %v428, %v476
      %v480 = vmul.f32 %v431, %v476
      %v481 = vmul.f32 %v434, %v476
      %v482 = vmul.f32 %v437, %v476
      %v483 = vmul.f32 %v440, %v476
      %v484 = vmul.f32 %v443, %v476
      %v485 = vmul.f32 %v446, %v476
      %v486 = vmul.f32 %v449, %v476
      %v487 = vmul.f32 %v452, %v476
      %v488 = vmul.f32 %v455, %v476
      %v489 = vmul.f32 %v458, %v476
      %v490 = vmul.f32 %v461, %v476
      %v491 = vmul.f32 %v464, %v476
      %v492 = vmul.f32 %v467, %v476
      %v493 = vmul.f32 %v470, %v476
      %v494 = vld [vmem:[%s1] sm:$0xf]
      %v496 = vsel %vm422, %v390, 0
      %v499 = vsel %vm422, %v391, 0
      %v502 = vsel %vm422, %v392, 0
      %v505 = vsel %vm422, %v393, 0
      %v508 = vsel %vm422, %v394, 0
      %v511 = vsel %vm422, %v395, 0
      %v514 = vsel %vm422, %v396, 0
      %v517 = vsel %vm422, %v397, 0
      %v520 = vsel %vm422, %v398, 0
      %v523 = vsel %vm422, %v399, 0
      %v526 = vsel %vm422, %v400, 0
      %v529 = vsel %vm422, %v401, 0
      %v532 = vsel %vm422, %v402, 0
      %v535 = vsel %vm422, %v403, 0
      %v538 = vsel %vm422, %v404, 0
      %v541 = vsel %vm422, %v405, 0
      %vm543 = vcmask 1043456
      %v545 = vsel %vm543, %v494, 0
      %547 = vmatprep.subr.mxu0 0.0
      %548 = vmatpush1.msra.mxu0 %v545
      %549 = vmatprep.subr.mxu0 0.0
      %550 = vmatpush1.msra.mxu0 0.0
      %551 = vmatprep.subr.mxu0 0.0
      %552 = vmatpush1.msra.mxu0 0.0
      %553 = vmatprep.subr.mxu0 0.0
      %554 = vmatpush1.msra.mxu0 0.0
      %555 = vmatprep.subr.mxu0 0.0
      %556 = vmatpush1.msra.mxu0 0.0
      %557 = vmatprep.subr.mxu0 0.0
      %558 = vmatpush1.msra.mxu0 0.0
      %559 = vmatprep.subr.mxu0 0.0
      %560 = vmatpush1.msra.mxu0 0.0
      %561 = vmatprep.subr.mxu0 0.0
      %562 = vmatpush1.msra.mxu0 0.0
      %563 = vmatprep.subr.mxu0 0.0
      %564 = vmatpush1.msra.mxu0 0.0
      %565 = vmatprep.subr.mxu0 0.0
      %566 = vmatpush1.msra.mxu0 0.0
      %567 = vmatprep.subr.mxu0 0.0
      %568 = vmatpush1.msra.mxu0 0.0
      %569 = vmatprep.subr.mxu0 0.0
      %570 = vmatpush1.msra.mxu0 0.0
      %571 = vmatprep.subr.mxu0 0.0
      %572 = vmatpush1.msra.mxu0 0.0
      %573 = vmatprep.subr.mxu0 0.0
      %574 = vmatpush1.msra.mxu0 0.0
      %575 = vmatprep.subr.mxu0 0.0
      %576 = vmatpush1.msra.mxu0 0.0
      %577 = vmatprep.subr.mxu0 0.0
      %578 = vmatpush1.msra.mxu0 0.0
      %579 = vmatprep.subr.mxu0 0.0
      %580 = vmatpush1.msra.mxu0 0.0
      %581 = vmatprep.subr.mxu0 0.0
      %582 = vmatpush1.msra.mxu0 0.0
      %583 = vmatprep.subr.mxu0 0.0
      %584 = vmatpush1.msra.mxu0 0.0
      %585 = vmatprep.subr.mxu0 0.0
      %586 = vmatpush1.msra.mxu0 0.0
      %587 = vmatprep.subr.mxu0 0.0
      %588 = vmatpush1.msra.mxu0 0.0
      %589 = vmatprep.subr.mxu0 0.0
      %590 = vmatpush1.msra.mxu0 0.0
      %591 = vmatprep.subr.mxu0 0.0
      %592 = vmatpush1.msra.mxu0 0.0
      %593 = vmatprep.subr.mxu0 0.0
      %594 = vmatpush1.msra.mxu0 0.0
      %595 = vmatprep.subr.mxu0 0.0
      %596 = vmatpush1.msra.mxu0 0.0
      %597 = vmatprep.subr.mxu0 0.0
      %598 = vmatpush1.msra.mxu0 0.0
      %599 = vmatprep.subr.mxu0 0.0
      %600 = vmatpush1.msra.mxu0 0.0
      %601 = vmatprep.subr.mxu0 0.0
      %602 = vmatpush1.msra.mxu0 0.0
      %603 = vmatprep.subr.mxu0 0.0
      %604 = vmatpush1.msra.mxu0 0.0
      %605 = vmatprep.subr.mxu0 0.0
      %606 = vmatpush1.msra.mxu0 0.0
      %607 = vmatprep.subr.mxu0 0.0
      %608 = vmatpush1.msra.mxu0 0.0
      %609 = vmatprep.subr.mxu0 0.0
      %610 = vmatpush1.msra.mxu0 0.0
      %611 = vmatprep.mubr.f32.mxu0 0.0
      %612 = vmatmul.mubr.f32.gmra.mrb[0].mxu0 %v496
      %v613 = vpop.f32.mrb[0].mxu0
      %v614 = vadd.f32 0.0, %v613
      %v615 = vpop.f32.mrb[0].mxu0
      %616 = vmatprep.mubr.f32.mxu0 0.0
      %617 = vmatmul.mubr.f32.gmra.mrb[0].mxu0 %v499
      %v618 = vpop.f32.mrb[0].mxu0
      %v619 = vadd.f32 0.0, %v618
      %v620 = vpop.f32.mrb[0].mxu0
      %621 = vmatprep.mubr.f32.mxu0 0.0
      %622 = vmatmul.mubr.f32.gmra.mrb[0].mxu0 %v502
      %v623 = vpop.f32.mrb[0].mxu0
      %v624 = vadd.f32 0.0, %v623
      %v625 = vpop.f32.mrb[0].mxu0
      %626 = vmatprep.mubr.f32.mxu0 0.0
      %627 = vmatmul.mubr.f32.gmra.mrb[0].mxu0 %v505
      %v628 = vpop.f32.mrb[0].mxu0
      %v629 = vadd.f32 0.0, %v628
      %v630 = vpop.f32.mrb[0].mxu0
      %631 = vmatprep.mubr.f32.mxu0 0.0
      %632 = vmatmul.mubr.f32.gmra.mrb[0].mxu0 %v508
      %v633 = vpop.f32.mrb[0].mxu0
      %v634 = vadd.f32 0.0, %v633
      %v635 = vpop.f32.mrb[0].mxu0
      %636 = vmatprep.mubr.f32.mxu0 0.0
      %637 = vmatmul.mubr.f32.gmra.mrb[0].mxu0 %v511
      %v638 = vpop.f32.mrb[0].mxu0
      %v639 = vadd.f32 0.0, %v638
      %v640 = vpop.f32.mrb[0].mxu0
      %641 = vmatprep.mubr.f32.mxu0 0.0
      %642 = vmatmul.mubr.f32.gmra.mrb[0].mxu0 %v514
      %v643 = vpop.f32.mrb[0].mxu0
      %v644 = vadd.f32 0.0, %v643
      %v645 = vpop.f32.mrb[0].mxu0
      %646 = vmatprep.mubr.f32.mxu0 0.0
      %647 = vmatmul.mubr.f32.gmra.mrb[0].mxu0 %v517
      %v648 = vpop.f32.mrb[0].mxu0
      %v649 = vadd.f32 0.0, %v648
      %v650 = vpop.f32.mrb[0].mxu0
      %651 = vmatprep.mubr.f32.mxu0 0.0
      %652 = vmatmul.mubr.f32.gmra.mrb[0].mxu0 %v520
      %v653 = vpop.f32.mrb[0].mxu0
      %v654 = vadd.f32 0.0, %v653
      %v655 = vpop.f32.mrb[0].mxu0
      %656 = vmatprep.mubr.f32.mxu0 0.0
      %657 = vmatmul.mubr.f32.gmra.mrb[0].mxu0 %v523
      %v658 = vpop.f32.mrb[0].mxu0
      %v659 = vadd.f32 0.0, %v658
      %v660 = vpop.f32.mrb[0].mxu0
      %661 = vmatprep.mubr.f32.mxu0 0.0
      %662 = vmatmul.mubr.f32.gmra.mrb[0].mxu0 %v526
      %v663 = vpop.f32.mrb[0].mxu0
      %v664 = vadd.f32 0.0, %v663
      %v665 = vpop.f32.mrb[0].mxu0
      %666 = vmatprep.mubr.f32.mxu0 0.0
      %667 = vmatmul.mubr.f32.gmra.mrb[0].mxu0 %v529
      %v668 = vpop.f32.mrb[0].mxu0
      %v669 = vadd.f32 0.0, %v668
      %v670 = vpop.f32.mrb[0].mxu0
      %671 = vmatprep.mubr.f32.mxu0 0.0
      %672 = vmatmul.mubr.f32.gmra.mrb[0].mxu0 %v532
      %v673 = vpop.f32.mrb[0].mxu0
      %v674 = vadd.f32 0.0, %v673
      %v675 = vpop.f32.mrb[0].mxu0
      %676 = vmatprep.mubr.f32.mxu0 0.0
      %677 = vmatmul.mubr.f32.gmra.mrb[0].mxu0 %v535
      %v678 = vpop.f32.mrb[0].mxu0
      %v679 = vadd.f32 0.0, %v678
      %v680 = vpop.f32.mrb[0].mxu0
      %681 = vmatprep.mubr.f32.mxu0 0.0
      %682 = vmatmul.mubr.f32.gmra.mrb[0].mxu0 %v538
      %v683 = vpop.f32.mrb[0].mxu0
      %v684 = vadd.f32 0.0, %v683
      %v685 = vpop.f32.mrb[0].mxu0
      %686 = vmatprep.mubr.f32.mxu0 0.0
      %687 = vmatmul.mubr.f32.gmra.mrb[0].mxu0 %v541
      %v688 = vpop.f32.mrb[0].mxu0
      %v689 = vadd.f32 0.0, %v688
      %v690 = vpop.f32.mrb[0].mxu0
      %691 = vdwg.mxu0
      %v692 = vadd.f32 %v478, %v614
      %v693 = vadd.f32 %v479, %v619
      %v694 = vadd.f32 %v480, %v624
      %v695 = vadd.f32 %v481, %v629
      %v696 = vadd.f32 %v482, %v634
      %v697 = vadd.f32 %v483, %v639
      %v698 = vadd.f32 %v484, %v644
      %v699 = vadd.f32 %v485, %v649
      %v700 = vadd.f32 %v486, %v654
      %v701 = vadd.f32 %v487, %v659
      %v702 = vadd.f32 %v488, %v664
      %v703 = vadd.f32 %v489, %v669
      %v704 = vadd.f32 %v490, %v674
      %v705 = vadd.f32 %v491, %v679
      %v706 = vadd.f32 %v492, %v684
      %v707 = vadd.f32 %v493, %v689
      %v708 = vld [vmem:[%s3] sm:$0x1]
      %v710 = vlaneseq
      %v711 = vshrl.u32 %v710, 7
      %v712 = vsub.s32 0, %v711
      %v713 = vrot.slane %v708, %v712
      %v715 = vadd.f32 %v692, %v713
      %v716 = vadd.f32 %v693, %v713
      %v717 = vadd.f32 %v694, %v713
      %v718 = vadd.f32 %v695, %v713
      %v719 = vadd.f32 %v696, %v713
      %v720 = vadd.f32 %v697, %v713
      %v721 = vadd.f32 %v698, %v713
      %v722 = vadd.f32 %v699, %v713
      %v723 = vadd.f32 %v700, %v713
      %v724 = vadd.f32 %v701, %v713
      %v725 = vadd.f32 %v702, %v713
      %v726 = vadd.f32 %v703, %v713
      %v727 = vadd.f32 %v704, %v713
      %v728 = vadd.f32 %v705, %v713
      %v729 = vadd.f32 %v706, %v713
      %v730 = vadd.f32 %v707, %v713
      %v731 = vmin.f32 %v715, 0.0
      %v732 = vmin.f32 %v716, 0.0
      %v733 = vmin.f32 %v717, 0.0
      %v734 = vmin.f32 %v718, 0.0
      %v735 = vmin.f32 %v719, 0.0
      %v736 = vmin.f32 %v720, 0.0
      %v737 = vmin.f32 %v721, 0.0
      %v738 = vmin.f32 %v722, 0.0
      %v739 = vmin.f32 %v723, 0.0
      %v740 = vmin.f32 %v724, 0.0
      %v741 = vmin.f32 %v725, 0.0
      %v742 = vmin.f32 %v726, 0.0
      %v743 = vmin.f32 %v727, 0.0
      %v744 = vmin.f32 %v728, 0.0
      %v745 = vmin.f32 %v729, 0.0
      %v746 = vmin.f32 %v730, 0.0
      %v747 = vmul.f32 %v731, 1.442695
      %v748 = vpow.pop %v747
      %v749 = vmul.f32 %v732, 1.442695
      %v750 = vpow.pop %v749
      %v751 = vmul.f32 %v733, 1.442695
      %v752 = vpow.pop %v751
      %v753 = vmul.f32 %v734, 1.442695
      %v754 = vpow.pop %v753
      %v755 = vmul.f32 %v735, 1.442695
      %v756 = vpow.pop %v755
      %v757 = vmul.f32 %v736, 1.442695
      %v758 = vpow.pop %v757
      %v759 = vmul.f32 %v737, 1.442695
      %v760 = vpow.pop %v759
      %v761 = vmul.f32 %v738, 1.442695
      %v762 = vpow.pop %v761
      %v763 = vmul.f32 %v739, 1.442695
      %v764 = vpow.pop %v763
      %v765 = vmul.f32 %v740, 1.442695
      %v766 = vpow.pop %v765
      %v767 = vmul.f32 %v741, 1.442695
      %v768 = vpow.pop %v767
      %v769 = vmul.f32 %v742, 1.442695
      %v770 = vpow.pop %v769
      %v771 = vmul.f32 %v743, 1.442695
      %v772 = vpow.pop %v771
      %v773 = vmul.f32 %v744, 1.442695
      %v774 = vpow.pop %v773
      %v775 = vmul.f32 %v745, 1.442695
      %v776 = vpow.pop %v775
      %v777 = vmul.f32 %v746, 1.442695
      %v778 = vpow.pop %v777
      %v779 = vld [vmem:[%s4] sm:$0xff]
      %v780 = vld [vmem:[%s4 + $0x8] sm:$0xff]
      %v781 = vld [vmem:[%s5] sm:$0x1]
      %v783 = vlaneseq
      %v784 = vshrl.u32 %v783, 7
      %v785 = vsub.s32 0, %v784
      %v786 = vrot.slane %v781, %v785
      %vm788 = vcmask 130048
      %v790 = vsel %vm788, %v748, 0
      %v793 = vsel %vm788, %v750, 0
      %v796 = vsel %vm788, %v752, 0
      %v799 = vsel %vm788, %v754, 0
      %v802 = vsel %vm788, %v756, 0
      %v805 = vsel %vm788, %v758, 0
      %v808 = vsel %vm788, %v760, 0
      %v811 = vsel %vm788, %v762, 0
      %v814 = vsel %vm788, %v764, 0
      %v817 = vsel %vm788, %v766, 0
      %v820 = vsel %vm788, %v768, 0
      %v823 = vsel %vm788, %v770, 0
      %v826 = vsel %vm788, %v772, 0
      %v829 = vsel %vm788, %v774, 0
      %v832 = vsel %vm788, %v776, 0
      %v835 = vsel %vm788, %v778, 0
      %837 = vmatprep.subr.mxu0 0.0
      %838 = vmatpush1.msra.mxu0 %v779
      %839 = vmatprep.subr.mxu0 0.0
      %840 = vmatpush1.msra.mxu0 %v780
      %841 = vmatprep.subr.mxu0 0.0
      %842 = vmatpush1.msra.mxu0 0.0
      %843 = vmatprep.subr.mxu0 0.0
      %844 = vmatpush1.msra.mxu0 0.0
      %845 = vmatprep.subr.mxu0 0.0
      %846 = vmatpush1.msra.mxu0 0.0
      %847 = vmatprep.subr.mxu0 0.0
      %848 = vmatpush1.msra.mxu0 0.0
      %849 = vmatprep.subr.mxu0 0.0
      %850 = vmatpush1.msra.mxu0 0.0
      %851 = vmatprep.subr.mxu0 0.0
      %852 = vmatpush1.msra.mxu0 0.0
      %853 = vmatprep.subr.mxu0 0.0
      %854 = vmatpush1.msra.mxu0 0.0
      %855 = vmatprep.subr.mxu0 0.0
      %856 = vmatpush1.msra.mxu0 0.0
      %857 = vmatprep.subr.mxu0 0.0
      %858 = vmatpush1.msra.mxu0 0.0
      %859 = vmatprep.subr.mxu0 0.0
      %860 = vmatpush1.msra.mxu0 0.0
      %861 = vmatprep.subr.mxu0 0.0
      %862 = vmatpush1.msra.mxu0 0.0
      %863 = vmatprep.subr.mxu0 0.0
      %864 = vmatpush1.msra.mxu0 0.0
      %865 = vmatprep.subr.mxu0 0.0
      %866 = vmatpush1.msra.mxu0 0.0
      %867 = vmatprep.subr.mxu0 0.0
      %868 = vmatpush1.msra.mxu0 0.0
      %869 = vmatprep.subr.mxu0 0.0
      %870 = vmatpush1.msra.mxu0 0.0
      %871 = vmatprep.subr.mxu0 0.0
      %872 = vmatpush1.msra.mxu0 0.0
      %873 = vmatprep.subr.mxu0 0.0
      %874 = vmatpush1.msra.mxu0 0.0
      %875 = vmatprep.subr.mxu0 0.0
      %876 = vmatpush1.msra.mxu0 0.0
      %877 = vmatprep.subr.mxu0 0.0
      %878 = vmatpush1.msra.mxu0 0.0
      %879 = vmatprep.subr.mxu0 0.0
      %880 = vmatpush1.msra.mxu0 0.0
      %881 = vmatprep.subr.mxu0 0.0
      %882 = vmatpush1.msra.mxu0 0.0
      %883 = vmatprep.subr.mxu0 0.0
      %884 = vmatpush1.msra.mxu0 0.0
      %885 = vmatprep.subr.mxu0 0.0
      %886 = vmatpush1.msra.mxu0 0.0
      %887 = vmatprep.subr.mxu0 0.0
      %888 = vmatpush1.msra.mxu0 0.0
      %889 = vmatprep.subr.mxu0 0.0
      %890 = vmatpush1.msra.mxu0 0.0
      %891 = vmatprep.subr.mxu0 0.0
      %892 = vmatpush1.msra.mxu0 0.0
      %893 = vmatprep.subr.mxu0 0.0
      %894 = vmatpush1.msra.mxu0 0.0
      %895 = vmatprep.subr.mxu0 0.0
      %896 = vmatpush1.msra.mxu0 0.0
      %897 = vmatprep.subr.mxu0 0.0
      %898 = vmatpush1.msra.mxu0 0.0
      %899 = vmatprep.subr.mxu0 0.0
      %900 = vmatpush1.msra.mxu0 0.0
      %901 = vmatprep.mubr.f32.mxu0 0.0
      %902 = vmatmul.mubr.f32.gmra.mrb[0].mxu0 %v790
      %v903 = vpop.f32.mrb[0].mxu0
      %v904 = vadd.f32 %v786, %v903
      %v905 = vpop.f32.mrb[0].mxu0
      %906 = vmatprep.mubr.f32.mxu0 0.0
      %907 = vmatmul.mubr.f32.gmra.mrb[0].mxu0 %v793
      %v908 = vpop.f32.mrb[0].mxu0
      %v909 = vadd.f32 %v786, %v908
      %v910 = vpop.f32.mrb[0].mxu0
      %911 = vmatprep.mubr.f32.mxu0 0.0
      %912 = vmatmul.mubr.f32.gmra.mrb[0].mxu0 %v796
      %v913 = vpop.f32.mrb[0].mxu0
      %v914 = vadd.f32 %v786, %v913
      %v915 = vpop.f32.mrb[0].mxu0
      %916 = vmatprep.mubr.f32.mxu0 0.0
      %917 = vmatmul.mubr.f32.gmra.mrb[0].mxu0 %v799
      %v918 = vpop.f32.mrb[0].mxu0
      %v919 = vadd.f32 %v786, %v918
      %v920 = vpop.f32.mrb[0].mxu0
      %921 = vmatprep.mubr.f32.mxu0 0.0
      %922 = vmatmul.mubr.f32.gmra.mrb[0].mxu0 %v802
      %v923 = vpop.f32.mrb[0].mxu0
      %v924 = vadd.f32 %v786, %v923
      %v925 = vpop.f32.mrb[0].mxu0
      %926 = vmatprep.mubr.f32.mxu0 0.0
      %927 = vmatmul.mubr.f32.gmra.mrb[0].mxu0 %v805
      %v928 = vpop.f32.mrb[0].mxu0
      %v929 = vadd.f32 %v786, %v928
      %v930 = vpop.f32.mrb[0].mxu0
      %931 = vmatprep.mubr.f32.mxu0 0.0
      %932 = vmatmul.mubr.f32.gmra.mrb[0].mxu0 %v808
      %v933 = vpop.f32.mrb[0].mxu0
      %v934 = vadd.f32 %v786, %v933
      %v935 = vpop.f32.mrb[0].mxu0
      %936 = vmatprep.mubr.f32.mxu0 0.0
      %937 = vmatmul.mubr.f32.gmra.mrb[0].mxu0 %v811
      %v938 = vpop.f32.mrb[0].mxu0
      %v939 = vadd.f32 %v786, %v938
      %v940 = vpop.f32.mrb[0].mxu0
      %941 = vmatprep.mubr.f32.mxu0 0.0
      %942 = vmatmul.mubr.f32.gmra.mrb[0].mxu0 %v814
      %v943 = vpop.f32.mrb[0].mxu0
      %v944 = vadd.f32 %v786, %v943
      %v945 = vpop.f32.mrb[0].mxu0
      %946 = vmatprep.mubr.f32.mxu0 0.0
      %947 = vmatmul.mubr.f32.gmra.mrb[0].mxu0 %v817
      %v948 = vpop.f32.mrb[0].mxu0
      %v949 = vadd.f32 %v786, %v948
      %v950 = vpop.f32.mrb[0].mxu0
      %951 = vmatprep.mubr.f32.mxu0 0.0
      %952 = vmatmul.mubr.f32.gmra.mrb[0].mxu0 %v820
      %v953 = vpop.f32.mrb[0].mxu0
      %v954 = vadd.f32 %v786, %v953
      %v955 = vpop.f32.mrb[0].mxu0
      %956 = vmatprep.mubr.f32.mxu0 0.0
      %957 = vmatmul.mubr.f32.gmra.mrb[0].mxu0 %v823
      %v958 = vpop.f32.mrb[0].mxu0
      %v959 = vadd.f32 %v786, %v958
      %v960 = vpop.f32.mrb[0].mxu0
      %961 = vmatprep.mubr.f32.mxu0 0.0
      %962 = vmatmul.mubr.f32.gmra.mrb[0].mxu0 %v826
      %v963 = vpop.f32.mrb[0].mxu0
      %v964 = vadd.f32 %v786, %v963
      %v965 = vpop.f32.mrb[0].mxu0
      %966 = vmatprep.mubr.f32.mxu0 0.0
      %967 = vmatmul.mubr.f32.gmra.mrb[0].mxu0 %v829
      %v968 = vpop.f32.mrb[0].mxu0
      %v969 = vadd.f32 %v786, %v968
      %v970 = vpop.f32.mrb[0].mxu0
      %971 = vmatprep.mubr.f32.mxu0 0.0
      %972 = vmatmul.mubr.f32.gmra.mrb[0].mxu0 %v832
      %v973 = vpop.f32.mrb[0].mxu0
      %v974 = vadd.f32 %v786, %v973
      %v975 = vpop.f32.mrb[0].mxu0
      %976 = vmatprep.mubr.f32.mxu0 0.0
      %977 = vmatmul.mubr.f32.gmra.mrb[0].mxu0 %v835
      %v978 = vpop.f32.mrb[0].mxu0
      %v979 = vadd.f32 %v786, %v978
      %v980 = vpop.f32.mrb[0].mxu0
      %981 = vdwg.mxu0
      %v982 = vmul.f32 %v904, %v904
      %v983 = vmul.f32 %v909, %v909
      %v984 = vmul.f32 %v914, %v914
      %v985 = vmul.f32 %v919, %v919
      %v986 = vmul.f32 %v924, %v924
      %v987 = vmul.f32 %v929, %v929
      %v988 = vmul.f32 %v934, %v934
      %v989 = vmul.f32 %v939, %v939
      %v990 = vmul.f32 %v944, %v944
      %v991 = vmul.f32 %v949, %v949
      %v992 = vmul.f32 %v954, %v954
      %v993 = vmul.f32 %v959, %v959
      %v994 = vmul.f32 %v964, %v964
      %v995 = vmul.f32 %v969, %v969
      %v996 = vmul.f32 %v974, %v974
      %v997 = vmul.f32 %v979, %v979
      %vm998 = vcmask 64512
      %v999 = vsel %vm998, %v982, 0.0
      %1000 = vadd.xlane.f32.xlu0 %v999
      %v1001 = vpop.xlane.xlu0 %1000
      %v1002 = vsel %vm998, %v983, 0.0
      %1003 = vadd.xlane.f32.xlu0 %v1002
      %v1004 = vpop.xlane.xlu0 %1003
      %v1005 = vsel %vm998, %v984, 0.0
      %1006 = vadd.xlane.f32.xlu0 %v1005
      %v1007 = vpop.xlane.xlu0 %1006
      %v1008 = vsel %vm998, %v985, 0.0
      %1009 = vadd.xlane.f32.xlu0 %v1008
      %v1010 = vpop.xlane.xlu0 %1009
      %v1011 = vsel %vm998, %v986, 0.0
      %1012 = vadd.xlane.f32.xlu0 %v1011
      %v1013 = vpop.xlane.xlu0 %1012
      %v1014 = vsel %vm998, %v987, 0.0
      %1015 = vadd.xlane.f32.xlu0 %v1014
      %v1016 = vpop.xlane.xlu0 %1015
      %v1017 = vsel %vm998, %v988, 0.0
      %1018 = vadd.xlane.f32.xlu0 %v1017
      %v1019 = vpop.xlane.xlu0 %1018
      %v1020 = vsel %vm998, %v989, 0.0
      %1021 = vadd.xlane.f32.xlu0 %v1020
      %v1022 = vpop.xlane.xlu0 %1021
      %v1023 = vsel %vm998, %v990, 0.0
      %1024 = vadd.xlane.f32.xlu0 %v1023
      %v1025 = vpop.xlane.xlu0 %1024
      %v1026 = vsel %vm998, %v991, 0.0
      %1027 = vadd.xlane.f32.xlu0 %v1026
      %v1028 = vpop.xlane.xlu0 %1027
      %v1029 = vsel %vm998, %v992, 0.0
      %1030 = vadd.xlane.f32.xlu0 %v1029
      %v1031 = vpop.xlane.xlu0 %1030
      %v1032 = vsel %vm998, %v993, 0.0
      %1033 = vadd.xlane.f32.xlu0 %v1032
      %v1034 = vpop.xlane.xlu0 %1033
      %v1035 = vsel %vm998, %v994, 0.0
      %1036 = vadd.xlane.f32.xlu0 %v1035
      %v1037 = vpop.xlane.xlu0 %1036
      %v1038 = vsel %vm998, %v995, 0.0
      %1039 = vadd.xlane.f32.xlu0 %v1038
      %v1040 = vpop.xlane.xlu0 %1039
      %v1041 = vsel %vm998, %v996, 0.0
      %1042 = vadd.xlane.f32.xlu0 %v1041
      %v1043 = vpop.xlane.xlu0 %1042
      %v1044 = vsel %vm998, %v997, 0.0
      %1045 = vadd.xlane.f32.xlu0 %v1044
      %v1046 = vpop.xlane.xlu0 %1045
      %v1047 = vld [vmem:[%s7] sm:$0x1]
      %v1049 = vlaneseq
      %v1050 = vshrl.u32 %v1049, 7
      %v1051 = vsub.s32 0, %v1050
      %v1052 = vrot.slane %v1047, %v1051
      %v1054 = vmul.f32 %v1001, %v1052
      %v1055 = vmul.f32 %v1004, %v1052
      %v1056 = vmul.f32 %v1007, %v1052
      %v1057 = vmul.f32 %v1010, %v1052
      %v1058 = vmul.f32 %v1013, %v1052
      %v1059 = vmul.f32 %v1016, %v1052
      %v1060 = vmul.f32 %v1019, %v1052
      %v1061 = vmul.f32 %v1022, %v1052
      %v1062 = vmul.f32 %v1025, %v1052
      %v1063 = vmul.f32 %v1028, %v1052
      %v1064 = vmul.f32 %v1031, %v1052
      %v1065 = vmul.f32 %v1034, %v1052
      %v1066 = vmul.f32 %v1037, %v1052
      %v1067 = vmul.f32 %v1040, %v1052
      %v1068 = vmul.f32 %v1043, %v1052
      %v1069 = vmul.f32 %v1046, %v1052
      %v1070 = vld [vmem:[%s6] sm:$0xff]
      %v1072 = vsel %vm998, %v904, 0
      %v1075 = vsel %vm998, %v909, 0
      %v1078 = vsel %vm998, %v914, 0
      %v1081 = vsel %vm998, %v919, 0
      %v1084 = vsel %vm998, %v924, 0
      %v1087 = vsel %vm998, %v929, 0
      %v1090 = vsel %vm998, %v934, 0
      %v1093 = vsel %vm998, %v939, 0
      %v1096 = vsel %vm998, %v944, 0
      %v1099 = vsel %vm998, %v949, 0
      %v1102 = vsel %vm998, %v954, 0
      %v1105 = vsel %vm998, %v959, 0
      %v1108 = vsel %vm998, %v964, 0
      %v1111 = vsel %vm998, %v969, 0
      %v1114 = vsel %vm998, %v974, 0
      %v1117 = vsel %vm998, %v979, 0
      %1119 = vmatprep.subr.mxu0 0.0
      %1120 = vmatpush1.msra.mxu0 %v1070
      %1121 = vmatprep.subr.mxu0 0.0
      %1122 = vmatpush1.msra.mxu0 0.0
      %1123 = vmatprep.subr.mxu0 0.0
      %1124 = vmatpush1.msra.mxu0 0.0
      %1125 = vmatprep.subr.mxu0 0.0
      %1126 = vmatpush1.msra.mxu0 0.0
      %1127 = vmatprep.subr.mxu0 0.0
      %1128 = vmatpush1.msra.mxu0 0.0
      %1129 = vmatprep.subr.mxu0 0.0
      %1130 = vmatpush1.msra.mxu0 0.0
      %1131 = vmatprep.subr.mxu0 0.0
      %1132 = vmatpush1.msra.mxu0 0.0
      %1133 = vmatprep.subr.mxu0 0.0
      %1134 = vmatpush1.msra.mxu0 0.0
      %1135 = vmatprep.subr.mxu0 0.0
      %1136 = vmatpush1.msra.mxu0 0.0
      %1137 = vmatprep.subr.mxu0 0.0
      %1138 = vmatpush1.msra.mxu0 0.0
      %1139 = vmatprep.subr.mxu0 0.0
      %1140 = vmatpush1.msra.mxu0 0.0
      %1141 = vmatprep.subr.mxu0 0.0
      %1142 = vmatpush1.msra.mxu0 0.0
      %1143 = vmatprep.subr.mxu0 0.0
      %1144 = vmatpush1.msra.mxu0 0.0
      %1145 = vmatprep.subr.mxu0 0.0
      %1146 = vmatpush1.msra.mxu0 0.0
      %1147 = vmatprep.subr.mxu0 0.0
      %1148 = vmatpush1.msra.mxu0 0.0
      %1149 = vmatprep.subr.mxu0 0.0
      %1150 = vmatpush1.msra.mxu0 0.0
      %1151 = vmatprep.subr.mxu0 0.0
      %1152 = vmatpush1.msra.mxu0 0.0
      %1153 = vmatprep.subr.mxu0 0.0
      %1154 = vmatpush1.msra.mxu0 0.0
      %1155 = vmatprep.subr.mxu0 0.0
      %1156 = vmatpush1.msra.mxu0 0.0
      %1157 = vmatprep.subr.mxu0 0.0
      %1158 = vmatpush1.msra.mxu0 0.0
      %1159 = vmatprep.subr.mxu0 0.0
      %1160 = vmatpush1.msra.mxu0 0.0
      %1161 = vmatprep.subr.mxu0 0.0
      %1162 = vmatpush1.msra.mxu0 0.0
      %1163 = vmatprep.subr.mxu0 0.0
      %1164 = vmatpush1.msra.mxu0 0.0
      %1165 = vmatprep.subr.mxu0 0.0
      %1166 = vmatpush1.msra.mxu0 0.0
      %1167 = vmatprep.subr.mxu0 0.0
      %1168 = vmatpush1.msra.mxu0 0.0
      %1169 = vmatprep.subr.mxu0 0.0
      %1170 = vmatpush1.msra.mxu0 0.0
      %1171 = vmatprep.subr.mxu0 0.0
      %1172 = vmatpush1.msra.mxu0 0.0
      %1173 = vmatprep.subr.mxu0 0.0
      %1174 = vmatpush1.msra.mxu0 0.0
      %1175 = vmatprep.subr.mxu0 0.0
      %1176 = vmatpush1.msra.mxu0 0.0
      %1177 = vmatprep.subr.mxu0 0.0
      %1178 = vmatpush1.msra.mxu0 0.0
      %1179 = vmatprep.subr.mxu0 0.0
      %1180 = vmatpush1.msra.mxu0 0.0
      %1181 = vmatprep.subr.mxu0 0.0
      %1182 = vmatpush1.msra.mxu0 0.0
      %1183 = vmatprep.mubr.f32.mxu0 0.0
      %1184 = vmatmul.mubr.f32.gmra.mrb[0].mxu0 %v1072
      %v1185 = vpop.f32.mrb[0].mxu0
      %v1186 = vadd.f32 0.0, %v1185
      %v1187 = vpop.f32.mrb[0].mxu0
      %1188 = vmatprep.mubr.f32.mxu0 0.0
      %1189 = vmatmul.mubr.f32.gmra.mrb[0].mxu0 %v1075
      %v1190 = vpop.f32.mrb[0].mxu0
      %v1191 = vadd.f32 0.0, %v1190
      %v1192 = vpop.f32.mrb[0].mxu0
      %1193 = vmatprep.mubr.f32.mxu0 0.0
      %1194 = vmatmul.mubr.f32.gmra.mrb[0].mxu0 %v1078
      %v1195 = vpop.f32.mrb[0].mxu0
      %v1196 = vadd.f32 0.0, %v1195
      %v1197 = vpop.f32.mrb[0].mxu0
      %1198 = vmatprep.mubr.f32.mxu0 0.0
      %1199 = vmatmul.mubr.f32.gmra.mrb[0].mxu0 %v1081
      %v1200 = vpop.f32.mrb[0].mxu0
      %v1201 = vadd.f32 0.0, %v1200
      %v1202 = vpop.f32.mrb[0].mxu0
      %1203 = vmatprep.mubr.f32.mxu0 0.0
      %1204 = vmatmul.mubr.f32.gmra.mrb[0].mxu0 %v1084
      %v1205 = vpop.f32.mrb[0].mxu0
      %v1206 = vadd.f32 0.0, %v1205
      %v1207 = vpop.f32.mrb[0].mxu0
      %1208 = vmatprep.mubr.f32.mxu0 0.0
      %1209 = vmatmul.mubr.f32.gmra.mrb[0].mxu0 %v1087
      %v1210 = vpop.f32.mrb[0].mxu0
      %v1211 = vadd.f32 0.0, %v1210
      %v1212 = vpop.f32.mrb[0].mxu0
      %1213 = vmatprep.mubr.f32.mxu0 0.0
      %1214 = vmatmul.mubr.f32.gmra.mrb[0].mxu0 %v1090
      %v1215 = vpop.f32.mrb[0].mxu0
      %v1216 = vadd.f32 0.0, %v1215
      %v1217 = vpop.f32.mrb[0].mxu0
      %1218 = vmatprep.mubr.f32.mxu0 0.0
      %1219 = vmatmul.mubr.f32.gmra.mrb[0].mxu0 %v1093
      %v1220 = vpop.f32.mrb[0].mxu0
      %v1221 = vadd.f32 0.0, %v1220
      %v1222 = vpop.f32.mrb[0].mxu0
      %1223 = vmatprep.mubr.f32.mxu0 0.0
      %1224 = vmatmul.mubr.f32.gmra.mrb[0].mxu0 %v1096
      %v1225 = vpop.f32.mrb[0].mxu0
      %v1226 = vadd.f32 0.0, %v1225
      %v1227 = vpop.f32.mrb[0].mxu0
      %1228 = vmatprep.mubr.f32.mxu0 0.0
      %1229 = vmatmul.mubr.f32.gmra.mrb[0].mxu0 %v1099
      %v1230 = vpop.f32.mrb[0].mxu0
      %v1231 = vadd.f32 0.0, %v1230
      %v1232 = vpop.f32.mrb[0].mxu0
      %1233 = vmatprep.mubr.f32.mxu0 0.0
      %1234 = vmatmul.mubr.f32.gmra.mrb[0].mxu0 %v1102
      %v1235 = vpop.f32.mrb[0].mxu0
      %v1236 = vadd.f32 0.0, %v1235
      %v1237 = vpop.f32.mrb[0].mxu0
      %1238 = vmatprep.mubr.f32.mxu0 0.0
      %1239 = vmatmul.mubr.f32.gmra.mrb[0].mxu0 %v1105
      %v1240 = vpop.f32.mrb[0].mxu0
      %v1241 = vadd.f32 0.0, %v1240
      %v1242 = vpop.f32.mrb[0].mxu0
      %1243 = vmatprep.mubr.f32.mxu0 0.0
      %1244 = vmatmul.mubr.f32.gmra.mrb[0].mxu0 %v1108
      %v1245 = vpop.f32.mrb[0].mxu0
      %v1246 = vadd.f32 0.0, %v1245
      %v1247 = vpop.f32.mrb[0].mxu0
      %1248 = vmatprep.mubr.f32.mxu0 0.0
      %1249 = vmatmul.mubr.f32.gmra.mrb[0].mxu0 %v1111
      %v1250 = vpop.f32.mrb[0].mxu0
      %v1251 = vadd.f32 0.0, %v1250
      %v1252 = vpop.f32.mrb[0].mxu0
      %1253 = vmatprep.mubr.f32.mxu0 0.0
      %1254 = vmatmul.mubr.f32.gmra.mrb[0].mxu0 %v1114
      %v1255 = vpop.f32.mrb[0].mxu0
      %v1256 = vadd.f32 0.0, %v1255
      %v1257 = vpop.f32.mrb[0].mxu0
      %1258 = vmatprep.mubr.f32.mxu0 0.0
      %1259 = vmatmul.mubr.f32.gmra.mrb[0].mxu0 %v1117
      %v1260 = vpop.f32.mrb[0].mxu0
      %v1261 = vadd.f32 0.0, %v1260
      %v1262 = vpop.f32.mrb[0].mxu0
      %1263 = vdwg.mxu0
      %v1264 = vadd.f32 %v1054, %v1186
      %v1265 = vadd.f32 %v1055, %v1191
      %v1266 = vadd.f32 %v1056, %v1196
      %v1267 = vadd.f32 %v1057, %v1201
      %v1268 = vadd.f32 %v1058, %v1206
      %v1269 = vadd.f32 %v1059, %v1211
      %v1270 = vadd.f32 %v1060, %v1216
      %v1271 = vadd.f32 %v1061, %v1221
      %v1272 = vadd.f32 %v1062, %v1226
      %v1273 = vadd.f32 %v1063, %v1231
      %v1274 = vadd.f32 %v1064, %v1236
      %v1275 = vadd.f32 %v1065, %v1241
      %v1276 = vadd.f32 %v1066, %v1246
      %v1277 = vadd.f32 %v1067, %v1251
      %v1278 = vadd.f32 %v1068, %v1256
      %v1279 = vadd.f32 %v1069, %v1261
      %v1280 = vld [vmem:[%s8] sm:$0x1]
      %v1282 = vlaneseq
      %v1283 = vshrl.u32 %v1282, 7
      %v1284 = vsub.s32 0, %v1283
      %v1285 = vrot.slane %v1280, %v1284
      %v1287 = vadd.f32 %v1264, %v1285
      %v1288 = vadd.f32 %v1265, %v1285
      %v1289 = vadd.f32 %v1266, %v1285
      %v1290 = vadd.f32 %v1267, %v1285
      %v1291 = vadd.f32 %v1268, %v1285
      %v1292 = vadd.f32 %v1269, %v1285
      %v1293 = vadd.f32 %v1270, %v1285
      %v1294 = vadd.f32 %v1271, %v1285
      %v1295 = vadd.f32 %v1272, %v1285
      %v1296 = vadd.f32 %v1273, %v1285
      %v1297 = vadd.f32 %v1274, %v1285
      %v1298 = vadd.f32 %v1275, %v1285
      %v1299 = vadd.f32 %v1276, %v1285
      %v1300 = vadd.f32 %v1277, %v1285
      %v1301 = vadd.f32 %v1278, %v1285
      %v1302 = vadd.f32 %v1279, %v1285
      %v1303 = vmin.f32 %v1287, 0.0
      %v1304 = vmin.f32 %v1288, 0.0
      %v1305 = vmin.f32 %v1289, 0.0
      %v1306 = vmin.f32 %v1290, 0.0
      %v1307 = vmin.f32 %v1291, 0.0
      %v1308 = vmin.f32 %v1292, 0.0
      %v1309 = vmin.f32 %v1293, 0.0
      %v1310 = vmin.f32 %v1294, 0.0
      %v1311 = vmin.f32 %v1295, 0.0
      %v1312 = vmin.f32 %v1296, 0.0
      %v1313 = vmin.f32 %v1297, 0.0
      %v1314 = vmin.f32 %v1298, 0.0
      %v1315 = vmin.f32 %v1299, 0.0
      %v1316 = vmin.f32 %v1300, 0.0
      %v1317 = vmin.f32 %v1301, 0.0
      %v1318 = vmin.f32 %v1302, 0.0
      %v1319 = vmul.f32 %v1303, 1.442695
      %v1320 = vpow.pop %v1319
      %v1321 = vmul.f32 %v1304, 1.442695
      %v1322 = vpow.pop %v1321
      %v1323 = vmul.f32 %v1305, 1.442695
      %v1324 = vpow.pop %v1323
      %v1325 = vmul.f32 %v1306, 1.442695
      %v1326 = vpow.pop %v1325
      %v1327 = vmul.f32 %v1307, 1.442695
      %v1328 = vpow.pop %v1327
      %v1329 = vmul.f32 %v1308, 1.442695
      %v1330 = vpow.pop %v1329
      %v1331 = vmul.f32 %v1309, 1.442695
      %v1332 = vpow.pop %v1331
      %v1333 = vmul.f32 %v1310, 1.442695
      %v1334 = vpow.pop %v1333
      %v1335 = vmul.f32 %v1311, 1.442695
      %v1336 = vpow.pop %v1335
      %v1337 = vmul.f32 %v1312, 1.442695
      %v1338 = vpow.pop %v1337
      %v1339 = vmul.f32 %v1313, 1.442695
      %v1340 = vpow.pop %v1339
      %v1341 = vmul.f32 %v1314, 1.442695
      %v1342 = vpow.pop %v1341
      %v1343 = vmul.f32 %v1315, 1.442695
      %v1344 = vpow.pop %v1343
      %v1345 = vmul.f32 %v1316, 1.442695
      %v1346 = vpow.pop %v1345
      %v1347 = vmul.f32 %v1317, 1.442695
      %v1348 = vpow.pop %v1347
      %v1349 = vmul.f32 %v1318, 1.442695
      %v1350 = vpow.pop %v1349
      %v1351 = vld [vmem:[%s9] sm:$0xff]
      %v1352 = vld [vmem:[%s9 + $0x8] sm:$0xff]
      %v1353 = vld [vmem:[%s10] sm:$0x1]
      %v1355 = vlaneseq
      %v1356 = vshrl.u32 %v1355, 7
      %v1357 = vsub.s32 0, %v1356
      %v1358 = vrot.slane %v1353, %v1357
      %v1361 = vsel %vm788, %v1320, 0
      %v1364 = vsel %vm788, %v1322, 0
      %v1367 = vsel %vm788, %v1324, 0
      %v1370 = vsel %vm788, %v1326, 0
      %v1373 = vsel %vm788, %v1328, 0
      %v1376 = vsel %vm788, %v1330, 0
      %v1379 = vsel %vm788, %v1332, 0
      %v1382 = vsel %vm788, %v1334, 0
      %v1385 = vsel %vm788, %v1336, 0
      %v1388 = vsel %vm788, %v1338, 0
      %v1391 = vsel %vm788, %v1340, 0
      %v1394 = vsel %vm788, %v1342, 0
      %v1397 = vsel %vm788, %v1344, 0
      %v1400 = vsel %vm788, %v1346, 0
      %v1403 = vsel %vm788, %v1348, 0
      %v1406 = vsel %vm788, %v1350, 0
      %1408 = vmatprep.subr.mxu0 0.0
      %1409 = vmatpush1.msra.mxu0 %v1351
      %1410 = vmatprep.subr.mxu0 0.0
      %1411 = vmatpush1.msra.mxu0 %v1352
      %1412 = vmatprep.subr.mxu0 0.0
      %1413 = vmatpush1.msra.mxu0 0.0
      %1414 = vmatprep.subr.mxu0 0.0
      %1415 = vmatpush1.msra.mxu0 0.0
      %1416 = vmatprep.subr.mxu0 0.0
      %1417 = vmatpush1.msra.mxu0 0.0
      %1418 = vmatprep.subr.mxu0 0.0
      %1419 = vmatpush1.msra.mxu0 0.0
      %1420 = vmatprep.subr.mxu0 0.0
      %1421 = vmatpush1.msra.mxu0 0.0
      %1422 = vmatprep.subr.mxu0 0.0
      %1423 = vmatpush1.msra.mxu0 0.0
      %1424 = vmatprep.subr.mxu0 0.0
      %1425 = vmatpush1.msra.mxu0 0.0
      %1426 = vmatprep.subr.mxu0 0.0
      %1427 = vmatpush1.msra.mxu0 0.0
      %1428 = vmatprep.subr.mxu0 0.0
      %1429 = vmatpush1.msra.mxu0 0.0
      %1430 = vmatprep.subr.mxu0 0.0
      %1431 = vmatpush1.msra.mxu0 0.0
      %1432 = vmatprep.subr.mxu0 0.0
      %1433 = vmatpush1.msra.mxu0 0.0
      %1434 = vmatprep.subr.mxu0 0.0
      %1435 = vmatpush1.msra.mxu0 0.0
      %1436 = vmatprep.subr.mxu0 0.0
      %1437 = vmatpush1.msra.mxu0 0.0
      %1438 = vmatprep.subr.mxu0 0.0
      %1439 = vmatpush1.msra.mxu0 0.0
      %1440 = vmatprep.subr.mxu0 0.0
      %1441 = vmatpush1.msra.mxu0 0.0
      %1442 = vmatprep.subr.mxu0 0.0
      %1443 = vmatpush1.msra.mxu0 0.0
      %1444 = vmatprep.subr.mxu0 0.0
      %1445 = vmatpush1.msra.mxu0 0.0
      %1446 = vmatprep.subr.mxu0 0.0
      %1447 = vmatpush1.msra.mxu0 0.0
      %1448 = vmatprep.subr.mxu0 0.0
      %1449 = vmatpush1.msra.mxu0 0.0
      %1450 = vmatprep.subr.mxu0 0.0
      %1451 = vmatpush1.msra.mxu0 0.0
      %1452 = vmatprep.subr.mxu0 0.0
      %1453 = vmatpush1.msra.mxu0 0.0
      %1454 = vmatprep.subr.mxu0 0.0
      %1455 = vmatpush1.msra.mxu0 0.0
      %1456 = vmatprep.subr.mxu0 0.0
      %1457 = vmatpush1.msra.mxu0 0.0
      %1458 = vmatprep.subr.mxu0 0.0
      %1459 = vmatpush1.msra.mxu0 0.0
      %1460 = vmatprep.subr.mxu0 0.0
      %1461 = vmatpush1.msra.mxu0 0.0
      %1462 = vmatprep.subr.mxu0 0.0
      %1463 = vmatpush1.msra.mxu0 0.0
      %1464 = vmatprep.subr.mxu0 0.0
      %1465 = vmatpush1.msra.mxu0 0.0
      %1466 = vmatprep.subr.mxu0 0.0
      %1467 = vmatpush1.msra.mxu0 0.0
      %1468 = vmatprep.subr.mxu0 0.0
      %1469 = vmatpush1.msra.mxu0 0.0
      %1470 = vmatprep.subr.mxu0 0.0
      %1471 = vmatpush1.msra.mxu0 0.0
      %1472 = vmatprep.mubr.f32.mxu0 0.0
      %1473 = vmatmul.mubr.f32.gmra.mrb[0].mxu0 %v1361
      %v1474 = vpop.f32.mrb[0].mxu0
      %v1475 = vadd.f32 %v1358, %v1474
      %v1476 = vpop.f32.mrb[0].mxu0
      %1477 = vmatprep.mubr.f32.mxu0 0.0
      %1478 = vmatmul.mubr.f32.gmra.mrb[0].mxu0 %v1364
      %v1479 = vpop.f32.mrb[0].mxu0
      %v1480 = vadd.f32 %v1358, %v1479
      %v1481 = vpop.f32.mrb[0].mxu0
      %1482 = vmatprep.mubr.f32.mxu0 0.0
      %1483 = vmatmul.mubr.f32.gmra.mrb[0].mxu0 %v1367
      %v1484 = vpop.f32.mrb[0].mxu0
      %v1485 = vadd.f32 %v1358, %v1484
      %v1486 = vpop.f32.mrb[0].mxu0
      %1487 = vmatprep.mubr.f32.mxu0 0.0
      %1488 = vmatmul.mubr.f32.gmra.mrb[0].mxu0 %v1370
      %v1489 = vpop.f32.mrb[0].mxu0
      %v1490 = vadd.f32 %v1358, %v1489
      %v1491 = vpop.f32.mrb[0].mxu0
      %1492 = vmatprep.mubr.f32.mxu0 0.0
      %1493 = vmatmul.mubr.f32.gmra.mrb[0].mxu0 %v1373
      %v1494 = vpop.f32.mrb[0].mxu0
      %v1495 = vadd.f32 %v1358, %v1494
      %v1496 = vpop.f32.mrb[0].mxu0
      %1497 = vmatprep.mubr.f32.mxu0 0.0
      %1498 = vmatmul.mubr.f32.gmra.mrb[0].mxu0 %v1376
      %v1499 = vpop.f32.mrb[0].mxu0
      %v1500 = vadd.f32 %v1358, %v1499
      %v1501 = vpop.f32.mrb[0].mxu0
      %1502 = vmatprep.mubr.f32.mxu0 0.0
      %1503 = vmatmul.mubr.f32.gmra.mrb[0].mxu0 %v1379
      %v1504 = vpop.f32.mrb[0].mxu0
      %v1505 = vadd.f32 %v1358, %v1504
      %v1506 = vpop.f32.mrb[0].mxu0
      %1507 = vmatprep.mubr.f32.mxu0 0.0
      %1508 = vmatmul.mubr.f32.gmra.mrb[0].mxu0 %v1382
      %v1509 = vpop.f32.mrb[0].mxu0
      %v1510 = vadd.f32 %v1358, %v1509
      %v1511 = vpop.f32.mrb[0].mxu0
      %1512 = vmatprep.mubr.f32.mxu0 0.0
      %1513 = vmatmul.mubr.f32.gmra.mrb[0].mxu0 %v1385
      %v1514 = vpop.f32.mrb[0].mxu0
      %v1515 = vadd.f32 %v1358, %v1514
      %v1516 = vpop.f32.mrb[0].mxu0
      %1517 = vmatprep.mubr.f32.mxu0 0.0
      %1518 = vmatmul.mubr.f32.gmra.mrb[0].mxu0 %v1388
      %v1519 = vpop.f32.mrb[0].mxu0
      %v1520 = vadd.f32 %v1358, %v1519
      %v1521 = vpop.f32.mrb[0].mxu0
      %1522 = vmatprep.mubr.f32.mxu0 0.0
      %1523 = vmatmul.mubr.f32.gmra.mrb[0].mxu0 %v1391
      %v1524 = vpop.f32.mrb[0].mxu0
      %v1525 = vadd.f32 %v1358, %v1524
      %v1526 = vpop.f32.mrb[0].mxu0
      %1527 = vmatprep.mubr.f32.mxu0 0.0
      %1528 = vmatmul.mubr.f32.gmra.mrb[0].mxu0 %v1394
      %v1529 = vpop.f32.mrb[0].mxu0
      %v1530 = vadd.f32 %v1358, %v1529
      %v1531 = vpop.f32.mrb[0].mxu0
      %1532 = vmatprep.mubr.f32.mxu0 0.0
      %1533 = vmatmul.mubr.f32.gmra.mrb[0].mxu0 %v1397
      %v1534 = vpop.f32.mrb[0].mxu0
      %v1535 = vadd.f32 %v1358, %v1534
      %v1536 = vpop.f32.mrb[0].mxu0
      %1537 = vmatprep.mubr.f32.mxu0 0.0
      %1538 = vmatmul.mubr.f32.gmra.mrb[0].mxu0 %v1400
      %v1539 = vpop.f32.mrb[0].mxu0
      %v1540 = vadd.f32 %v1358, %v1539
      %v1541 = vpop.f32.mrb[0].mxu0
      %1542 = vmatprep.mubr.f32.mxu0 0.0
      %1543 = vmatmul.mubr.f32.gmra.mrb[0].mxu0 %v1403
      %v1544 = vpop.f32.mrb[0].mxu0
      %v1545 = vadd.f32 %v1358, %v1544
      %v1546 = vpop.f32.mrb[0].mxu0
      %1547 = vmatprep.mubr.f32.mxu0 0.0
      %1548 = vmatmul.mubr.f32.gmra.mrb[0].mxu0 %v1406
      %v1549 = vpop.f32.mrb[0].mxu0
      %v1550 = vadd.f32 %v1358, %v1549
      %v1551 = vpop.f32.mrb[0].mxu0
      %1552 = vdwg.mxu0
      %1553 = vst.msk [vmem:[%s388] sm:$0xff] %vm422, %v1475
      %1554 = vst.msk [vmem:[%s388 + $0x8] sm:$0xff] %vm422, %v1480
      %1555 = vst.msk [vmem:[%s388 + $0x10] sm:$0xff] %vm422, %v1485
      %1556 = vst.msk [vmem:[%s388 + $0x18] sm:$0xff] %vm422, %v1490
      %1557 = vst.msk [vmem:[%s388 + $0x20] sm:$0xff] %vm422, %v1495
      %1558 = vst.msk [vmem:[%s388 + $0x28] sm:$0xff] %vm422, %v1500
      %1559 = vst.msk [vmem:[%s388 + $0x30] sm:$0xff] %vm422, %v1505
      %1560 = vst.msk [vmem:[%s388 + $0x38] sm:$0xff] %vm422, %v1510
      %1561 = vst.msk [vmem:[%s388 + $0x40] sm:$0xff] %vm422, %v1515
      %1562 = vst.msk [vmem:[%s388 + $0x48] sm:$0xff] %vm422, %v1520
      %1563 = vst.msk [vmem:[%s388 + $0x50] sm:$0xff] %vm422, %v1525
      %1564 = vst.msk [vmem:[%s388 + $0x58] sm:$0xff] %vm422, %v1530
      %1565 = vst.msk [vmem:[%s388 + $0x60] sm:$0xff] %vm422, %v1535
      %1566 = vst.msk [vmem:[%s388 + $0x68] sm:$0xff] %vm422, %v1540
      %1567 = vst.msk [vmem:[%s388 + $0x70] sm:$0xff] %vm422, %v1545
      %1568 = vst.msk [vmem:[%s388 + $0x78] sm:$0xff] %vm422, %v1550
      %s1569 = smul.u32 16, %s22
      %p1570 = scmp.lt.s32.totalorder %s1569, 127
      %s1571 = scalar_select %p1570, %s1569, 127
      %s1572 = smul.addr %s1571, 8
      %s1573 = scalar_lea.vmem %s11, %s1572
      // Predicated region
      $region65: #{rbf_net_forward.1} parent=63 // pred_check
        %p1574 = pneg %p276
      $region66: #{rbf_net_forward.1} parent=63 // pred_check_branch
        %1576 = sbr.rel (%p1574) target = $region68
      $region67: #{rbf_net_forward.1} parent=63 // pred_region
        %s1577 = smul.u32 16, %s22
      $region68: #{rbf_net_forward.1} parent=63 // pred_fallthru
        _
    $region64: #{rbf_net_forward.1} parent=5 // pred_fallthru
      _
    %p1578 = scmp.le.s32.totalorder 2, %s17
    // Predicated region
    $region69: #{rbf_net_forward.1} parent=5 // pred_check
      %p1579 = pneg %p1578
    $region70: #{rbf_net_forward.1} parent=5 // pred_check_branch
      %1581 = sbr.rel (%p1579) target = $region72
    $region71: #{rbf_net_forward.1} parent=5 // pred_region
      %s1582 = ssub.s32 %s17, 2
      // Predicated region
      $region73: #{rbf_net_forward.1} parent=71 // pred_check
        %p1583 = pneg %p282
      $region74: #{rbf_net_forward.1} parent=71 // pred_check_branch
        %1585 = sbr.rel (%p1583) target = $region76
      $region75: #{rbf_net_forward.1} parent=71 // pred_region
        %s1586 = smul.u32 16, %s23
        %p1587 = scmp.lt.s32.totalorder %s1586, 127
        %s1588 = scalar_select %p1587, %s1586, 127
        %s1589 = smul.addr %s1588, 8
        %s1590 = scalar_lea.vmem %s11, %s1589
      $region76: #{rbf_net_forward.1} parent=71 // pred_fallthru
        _
    $region72: #{rbf_net_forward.1} parent=5 // pred_fallthru
      _
  $region6: #{rbf_net_forward.1} parent=0 // loop_footer
    %s21 = sadd.s32 1, %s17
  $region7: #{rbf_net_forward.1} parent=0 // loop_footer_branch
    %16 = sbr.rel target = $region3
  $region8: #{rbf_net_forward.1} parent=0 // loop_exit
    _

</llo_original>
